<compile_context>
chip_gen: v7x
topology: tpu7x:2x2x1
jax: 0.10.0
libtpu: 0.0.40
codegen_flags: <defaults>
</compile_context>

<pallas_src>
import functools

import numpy as np
import jax
import jax.numpy as jnp
from jax import lax
from jax.experimental import pallas as pl
from jax.experimental.pallas import tpu as pltpu


# ---------------------------------------------------------------------------
# Pallas kernel: fused matmul + bias + optional ReLU
# ---------------------------------------------------------------------------
def _mm_bias_act_kernel(a_ref, b_ref, bias_ref, o_ref, *, relu):
    # a_ref   : (tile_m, K)      bf16 (or f32) operand tile
    # b_ref   : (K, Npad)        resident weight block (Npad multiple of 128)
    # bias_ref: (1, Npad)        f32 bias (zero-padded)
    # o_ref   : (tile_m, Npad)   f32, lane-dense single store
    acc = jnp.dot(a_ref[...], b_ref[...], preferred_element_type=jnp.float32)
    acc = acc + bias_ref[...]
    if relu:
        acc = jnp.maximum(acc, 0.0)
    o_ref[...] = acc.astype(o_ref.dtype)


def _round_up(x, m):
    return (x + m - 1) // m * m


def matmul_bias_act(a, b, bias=None, *, relu=False,
                    compute_dtype=jnp.bfloat16, out_dtype=jnp.float32,
                    tile_m=128):
    """out = act(a @ b + bias). Pads output columns to a multiple of 128 so the
    Pallas store is lane-dense, pads rows to a multiple of 8, slices back."""
    M, K = a.shape
    K2, Nn = b.shape
    assert K == K2
    Mp = _round_up(M, 8)
    Np = _round_up(Nn, 128)
    tm = tile_m if (Mp >= tile_m and Mp % tile_m == 0) else Mp

    a_p = a if Mp == M else jnp.pad(a, ((0, Mp - M), (0, 0)))
    b_p = b if Np == Nn else jnp.pad(b, ((0, 0), (0, Np - Nn)))
    if bias is None:
        bias = jnp.zeros((Nn,), jnp.float32)
    bias_p = jnp.pad(bias.astype(jnp.float32), (0, Np - Nn)).reshape(1, Np)

    a_p = a_p.astype(compute_dtype)
    b_p = b_p.astype(compute_dtype)
    cd_bytes = jnp.dtype(compute_dtype).itemsize

    cost = pl.CostEstimate(
        flops=2 * Mp * K * Np,
        transcendentals=0,
        bytes_accessed=(Mp * K + K * Np) * cd_bytes + (Mp + 1) * Np * 4,
    )

    out = pl.pallas_call(
        functools.partial(_mm_bias_act_kernel, relu=relu),
        out_shape=jax.ShapeDtypeStruct((Mp, Np), out_dtype),
        grid=(Mp // tm,),
        in_specs=[
            pl.BlockSpec((tm, K), lambda i: (i, 0)),
            pl.BlockSpec((K, Np), lambda i: (0, 0)),    # resident weight block
            pl.BlockSpec((1, Np), lambda i: (0, 0)),    # resident bias block
        ],
        out_specs=pl.BlockSpec((tm, Np), lambda i: (i, 0)),
        compiler_params=pltpu.CompilerParams(
            dimension_semantics=("parallel",),
            vmem_limit_bytes=32 * 1024 * 1024),
        cost_estimate=cost,
    )(a_p, b_p, bias_p)
    return out[:M, :Nn]


# ---------------------------------------------------------------------------
# Conv3x3 (padding=1) as a single im2col matmul
# ---------------------------------------------------------------------------
def conv3x3(x, w, b, *, stride=1, relu=False):
    """3x3 conv, padding=1, NHWC input, HWIO weight. One MXU matmul."""
    N, H, W, Cin = x.shape
    Cout = w.shape[-1]
    Ho = (H + 2 - 3) // stride + 1
    Wo = (W + 2 - 3) // stride + 1

    xp = jnp.pad(x, ((0, 0), (1, 1), (1, 1), (0, 0)))
    cols = []
    for kh in range(3):
        for kw in range(3):
            cols.append(xp[:, kh:kh + stride * (Ho - 1) + 1:stride,
                              kw:kw + stride * (Wo - 1) + 1:stride, :])
    # (N*Ho*Wo, 9*Cin): taps folded into the contraction (K) dimension,
    # batch folded into the row (M) dimension.
    im2col = jnp.concatenate(cols, axis=-1).reshape(N * Ho * Wo, 9 * Cin)
    wf = w.reshape(9 * Cin, Cout)

    out = matmul_bias_act(im2col, wf, b, relu=relu)
    return out.reshape(N, Ho, Wo, Cout)


# ---------------------------------------------------------------------------
# Separable bilinear upsample (align_corners=False), two lane-dense matmuls
# ---------------------------------------------------------------------------
def _bilinear_1d(out_size, in_size):
    """PyTorch F.interpolate(mode='bilinear', align_corners=False) 1-D weights."""
    scale = in_size / out_size
    A = np.zeros((out_size, in_size), dtype=np.float32)
    for d in range(out_size):
        src = (d + 0.5) * scale - 0.5
        src = max(src, 0.0)
        i0 = min(int(np.floor(src)), in_size - 1)
        i1 = min(i0 + 1, in_size - 1)
        lam = src - i0
        A[d, i0] += 1.0 - lam
        A[d, i1] += lam
    return A


def bilinear_upsample(x, Ah, Aw):
    """NHWC bilinear resize: Ah along H then Aw along W (separable)."""
    N, Hi, Wi, C = x.shape
    Ho, Wo = Ah.shape[0], Aw.shape[0]
    # H pass: (Ho,Hi) @ (Hi, N*Wi*C)
    xh = jnp.transpose(x, (1, 0, 2, 3)).reshape(Hi, N * Wi * C)
    yh = matmul_bias_act(Ah, xh).reshape(Ho, N, Wi, C)
    # W pass: (Wo,Wi) @ (Wi, Ho*N*C)
    xw = jnp.transpose(yh, (2, 0, 1, 3)).reshape(Wi, Ho * N * C)
    yw = matmul_bias_act(Aw, xw).reshape(Wo, Ho, N, C)
    return jnp.transpose(yw, (2, 1, 0, 3))              # (N, Ho, Wo, C)


# ---------------------------------------------------------------------------
# Parameters (glue)
# ---------------------------------------------------------------------------
def init_params(key):
    def conv_p(k, cin, cout):
        k1, k2 = jax.random.split(k)
        w = jax.random.normal(k1, (3, 3, cin, cout), jnp.float32) / np.sqrt(9.0 * cin)
        b = jax.random.normal(k2, (cout,), jnp.float32) * 0.01
        return w, b

    ks = jax.random.split(key, 4)
    return {
        "enc0": conv_p(ks[0], 4, 8),     # Conv2d(4, 8, 3, s=1, p=1) + ReLU
        "enc1": conv_p(ks[1], 8, 16),    # Conv2d(8, 16, 3, s=2, p=1) + ReLU
        "dec0": conv_p(ks[2], 16, 8),    # Conv2d(16, 8, 3, s=1, p=1) + ReLU
        "dec1": conv_p(ks[3], 16, 4),    # Conv2d(16, 4, 3, s=1, p=1)
    }


# ---------------------------------------------------------------------------
# UNetBackbone.forward (skip_connections=True, Sequential encoder & decoder)
# ---------------------------------------------------------------------------
def unet_forward(x_nchw, params):
    x = jnp.transpose(x_nchw, (0, 2, 3, 1))            # NCHW -> NHWC

    # encoder: record feature after each layer (self.encoder_features)
    encoder_features = []
    x = conv3x3(x, *params["enc0"], stride=1, relu=True)
    encoder_features.append(x)
    x = conv3x3(x, *params["enc1"], stride=2, relu=True)
    encoder_features.append(x)

    # decoder with skip connections (mirrors the PyTorch loop)
    x_dec = x
    x_dec = conv3x3(x_dec, *params["dec0"], stride=1, relu=True)   # layer i=0
    skip = encoder_features[-2]
    if x_dec.shape[1:3] != skip.shape[1:3]:
        Ah = jnp.asarray(_bilinear_1d(skip.shape[1], x_dec.shape[1]))
        Aw = jnp.asarray(_bilinear_1d(skip.shape[2], x_dec.shape[2]))
        x_dec = bilinear_upsample(x_dec, Ah, Aw)
    x_dec = jnp.concatenate([x_dec, skip], axis=-1)                # torch.cat dim=1
    x_dec = conv3x3(x_dec, *params["dec1"], stride=1, relu=False)  # last layer

    return jnp.transpose(x_dec, (0, 3, 1, 2))           # NHWC -> NCHW


# ---------------------------------------------------------------------------
# Pure-JAX reference (same bf16 operand quantization, f32 accumulation)
# ---------------------------------------------------------------------------
def _q(t):
    return t.astype(jnp.bfloat16).astype(jnp.float32)


def _ref_conv(x, w, b, stride, relu):
    o = lax.conv_general_dilated(
        _q(x), _q(w), (stride, stride), ((1, 1), (1, 1)),
        dimension_numbers=("NHWC", "HWIO", "NHWC"),
        precision=lax.Precision.HIGHEST)
    o = o + b
    return jnp.maximum(o, 0.0) if relu else o


def _ref_upsample(x, Ah, Aw):
    yh = jnp.einsum("oh,nhwc->nowc", _q(Ah), _q(x),
                    precision=lax.Precision.HIGHEST)
    yw = jnp.einsum("pw,nowc->nopc", _q(Aw), _q(yh),
                    precision=lax.Precision.HIGHEST)
    return yw


def ref_forward(x_nchw, params):
    x = jnp.transpose(x_nchw, (0, 2, 3, 1))
    feats = []
    x = _ref_conv(x, *params["enc0"], 1, True); feats.append(x)
    x = _ref_conv(x, *params["enc1"], 2, True); feats.append(x)
    d = _ref_conv(x, *params["dec0"], 1, True)
    skip = feats[-2]
    if d.shape[1:3] != skip.shape[1:3]:
        Ah = jnp.asarray(_bilinear_1d(skip.shape[1], d.shape[1]))
        Aw = jnp.asarray(_bilinear_1d(skip.shape[2], d.shape[2]))
        d = _ref_upsample(d, Ah, Aw)
    d = jnp.concatenate([d, skip], axis=-1)
    d = _ref_conv(d, *params["dec1"], 1, False)
    return jnp.transpose(d, (0, 3, 1, 2))


# ---------------------------------------------------------------------------
if __name__ == "__main__":
    key = jax.random.PRNGKey(0)
    k_x, k_p = jax.random.split(key)

    x = jax.random.normal(k_x, (2, 4, 16, 16), jnp.float32)   # NCHW input
    params = init_params(k_p)

    fwd = jax.jit(unet_forward)
    out = jax.block_until_ready(fwd(x, params))
    ref = jax.block_until_ready(ref_forward(x, params))

    assert out.shape == (2, 4, 16, 16), out.shape
    # bf16 operands, f32 accumulation: differences come only from bf16
    # re-quantization between layers and accumulation order.
    np.testing.assert_allclose(np.asarray(out), np.asarray(ref),
                               rtol=1e-2, atol=1e-2)
    print("KERNEL_OK")
</pallas_src>

<mosaic_0001>
module attributes {stable_mosaic.version = 11 : i64} {
  func.func @_mm_bias_act_kernel(%arg0: i32, %arg1: memref<128x36xbf16, #tpu.memory_space<vmem>>, %arg2: memref<36x128xbf16, #tpu.memory_space<vmem>>, %arg3: memref<1x128xf32, #tpu.memory_space<vmem>>, %arg4: memref<128x128xf32, #tpu.memory_space<vmem>>) attributes {dimension_semantics = [#tpu.dimension_semantics<parallel>], iteration_bounds = array<i64: 4>, scalar_prefetch = 0 : i64, scratch_operands = 0 : i64, tpu.core_type = #tpu.core_type<tc>, window_params = [{transform_indices = @transform_0, window_bounds = array<i64: 128, 36>}, {pipeline_mode = #tpu.pipeline_mode<synchronous>, transform_indices = @transform_1, window_bounds = array<i64: 36, 128>}, {pipeline_mode = #tpu.pipeline_mode<synchronous>, transform_indices = @transform_2, window_bounds = array<i64: 1, 128>}, {transform_indices = @transform_3, window_bounds = array<i64: 128, 128>}]} {
    %c0 = arith.constant 0 : index
    %c0_0 = arith.constant 0 : index
    %0 = vector.load %arg1[%c0, %c0_0] : memref<128x36xbf16, #tpu.memory_space<vmem>>, vector<128x36xbf16>
    %c0_1 = arith.constant 0 : index
    %c0_2 = arith.constant 0 : index
    %1 = vector.load %arg2[%c0_1, %c0_2] : memref<36x128xbf16, #tpu.memory_space<vmem>>, vector<36x128xbf16>
    %cst = arith.constant dense<0.000000e+00> : vector<128x128xf32>
    %2 = tpu.matmul %0, %1, %cst {dimension_numbers = #tpu.dot_dimension_numbers<[1], [0], [0], [1], [0, 0, 1, 1], [], []>} : vector<128x36xbf16>, vector<36x128xbf16>, vector<128x128xf32> -> vector<128x128xf32>
    %c0_3 = arith.constant 0 : index
    %c0_4 = arith.constant 0 : index
    %3 = vector.load %arg3[%c0_3, %c0_4] : memref<1x128xf32, #tpu.memory_space<vmem>>, vector<1x128xf32>
    %4 = vector.broadcast %3 : vector<1x128xf32> to vector<128x128xf32>
    %5 = arith.addf %2, %4 : vector<128x128xf32>
    %cst_5 = arith.constant 0.000000e+00 : f32
    %6 = vector.broadcast %cst_5 : f32 to vector<128x128xf32>
    %7 = arith.maximumf %5, %6 : vector<128x128xf32>
    %c0_6 = arith.constant 0 : index
    %c0_7 = arith.constant 0 : index
    %8 = vector.load %arg4[%c0_6, %c0_7] : memref<128x128xf32, #tpu.memory_space<vmem>>, vector<128x128xf32>
    tpu.vector_store %arg4[%c0_6, %c0_7], %7 {strides = array<i32>} : memref<128x128xf32, #tpu.memory_space<vmem>>, vector<128x128xf32>,
    return
  }
  func.func @transform_0(%arg0: i32) -> (i32, i32) {
    %c0_i32 = arith.constant 0 : i32
    %c0_i32_0 = arith.constant 0 : i32
    return %arg0, %c0_i32 : i32, i32
  }
  func.func @transform_1(%arg0: i32) -> (i32, i32) {
    %c0_i32 = arith.constant 0 : i32
    %c0_i32_0 = arith.constant 0 : i32
    %c0_i32_1 = arith.constant 0 : i32
    return %c0_i32, %c0_i32_0 : i32, i32
  }
  func.func @transform_2(%arg0: i32) -> (i32, i32) {
    %c0_i32 = arith.constant 0 : i32
    %c0_i32_0 = arith.constant 0 : i32
    %c0_i32_1 = arith.constant 0 : i32
    return %c0_i32, %c0_i32_0 : i32, i32
  }
  func.func @transform_3(%arg0: i32) -> (i32, i32) {
    %c0_i32 = arith.constant 0 : i32
    %c0_i32_0 = arith.constant 0 : i32
    return %arg0, %c0_i32 : i32, i32
  }
}

module attributes {stable_mosaic.version = 11 : i64} {
  func.func @_mm_bias_act_kernel(%arg0: i32, %arg1: memref<128x72xbf16, #tpu.memory_space<vmem>>, %arg2: memref<72x128xbf16, #tpu.memory_space<vmem>>, %arg3: memref<1x128xf32, #tpu.memory_space<vmem>>, %arg4: memref<128x128xf32, #tpu.memory_space<vmem>>) attributes {dimension_semantics = [#tpu.dimension_semantics<parallel>], iteration_bounds = array<i64: 1>, scalar_prefetch = 0 : i64, scratch_operands = 0 : i64, tpu.core_type = #tpu.core_type<tc>, window_params = [{transform_indices = @transform_0, window_bounds = array<i64: 128, 72>}, {pipeline_mode = #tpu.pipeline_mode<synchronous>, transform_indices = @transform_1, window_bounds = array<i64: 72, 128>}, {pipeline_mode = #tpu.pipeline_mode<synchronous>, transform_indices = @transform_2, window_bounds = array<i64: 1, 128>}, {transform_indices = @transform_3, window_bounds = array<i64: 128, 128>}]} {
    %c0 = arith.constant 0 : index
    %c0_0 = arith.constant 0 : index
    %0 = vector.load %arg1[%c0, %c0_0] : memref<128x72xbf16, #tpu.memory_space<vmem>>, vector<128x72xbf16>
    %c0_1 = arith.constant 0 : index
    %c0_2 = arith.constant 0 : index
    %1 = vector.load %arg2[%c0_1, %c0_2] : memref<72x128xbf16, #tpu.memory_space<vmem>>, vector<72x128xbf16>
    %cst = arith.constant dense<0.000000e+00> : vector<128x128xf32>
    %2 = tpu.matmul %0, %1, %cst {dimension_numbers = #tpu.dot_dimension_numbers<[1], [0], [0], [1], [0, 0, 1, 1], [], []>} : vector<128x72xbf16>, vector<72x128xbf16>, vector<128x128xf32> -> vector<128x128xf32>
    %c0_3 = arith.constant 0 : index
    %c0_4 = arith.constant 0 : index
    %3 = vector.load %arg3[%c0_3, %c0_4] : memref<1x128xf32, #tpu.memory_space<vmem>>, vector<1x128xf32>
    %4 = vector.broadcast %3 : vector<1x128xf32> to vector<128x128xf32>
    %5 = arith.addf %2, %4 : vector<128x128xf32>
    %cst_5 = arith.constant 0.000000e+00 : f32
    %6 = vector.broadcast %cst_5 : f32 to vector<128x128xf32>
    %7 = arith.maximumf %5, %6 : vector<128x128xf32>
    %c0_6 = arith.constant 0 : index
    %c0_7 = arith.constant 0 : index
    %8 = vector.load %arg4[%c0_6, %c0_7] : memref<128x128xf32, #tpu.memory_space<vmem>>, vector<128x128xf32>
    tpu.vector_store %arg4[%c0_6, %c0_7], %7 {strides = array<i32>} : memref<128x128xf32, #tpu.memory_space<vmem>>, vector<128x128xf32>,
    return
  }
  func.func @transform_0(%arg0: i32) -> (i32, i32) {
    %c0_i32 = arith.constant 0 : i32
    %c0_i32_0 = arith.constant 0 : i32
    return %arg0, %c0_i32 : i32, i32
  }
  func.func @transform_1(%arg0: i32) -> (i32, i32) {
    %c0_i32 = arith.constant 0 : i32
    %c0_i32_0 = arith.constant 0 : i32
    %c0_i32_1 = arith.constant 0 : i32
    return %c0_i32, %c0_i32_0 : i32, i32
  }
  func.func @transform_2(%arg0: i32) -> (i32, i32) {
    %c0_i32 = arith.constant 0 : i32
    %c0_i32_0 = arith.constant 0 : i32
    %c0_i32_1 = arith.constant 0 : i32
    return %c0_i32, %c0_i32_0 : i32, i32
  }
  func.func @transform_3(%arg0: i32) -> (i32, i32) {
    %c0_i32 = arith.constant 0 : i32
    %c0_i32_0 = arith.constant 0 : i32
    return %arg0, %c0_i32 : i32, i32
  }
}

module attributes {stable_mosaic.version = 11 : i64} {
  func.func @_mm_bias_act_kernel(%arg0: i32, %arg1: memref<128x144xbf16, #tpu.memory_space<vmem>>, %arg2: memref<144x128xbf16, #tpu.memory_space<vmem>>, %arg3: memref<1x128xf32, #tpu.memory_space<vmem>>, %arg4: memref<128x128xf32, #tpu.memory_space<vmem>>) attributes {dimension_semantics = [#tpu.dimension_semantics<parallel>], iteration_bounds = array<i64: 1>, scalar_prefetch = 0 : i64, scratch_operands = 0 : i64, tpu.core_type = #tpu.core_type<tc>, window_params = [{transform_indices = @transform_0, window_bounds = array<i64: 128, 144>}, {pipeline_mode = #tpu.pipeline_mode<synchronous>, transform_indices = @transform_1, window_bounds = array<i64: 144, 128>}, {pipeline_mode = #tpu.pipeline_mode<synchronous>, transform_indices = @transform_2, window_bounds = array<i64: 1, 128>}, {transform_indices = @transform_3, window_bounds = array<i64: 128, 128>}]} {
    %c0 = arith.constant 0 : index
    %c0_0 = arith.constant 0 : index
    %0 = vector.load %arg1[%c0, %c0_0] : memref<128x144xbf16, #tpu.memory_space<vmem>>, vector<128x144xbf16>
    %c0_1 = arith.constant 0 : index
    %c0_2 = arith.constant 0 : index
    %1 = vector.load %arg2[%c0_1, %c0_2] : memref<144x128xbf16, #tpu.memory_space<vmem>>, vector<144x128xbf16>
    %cst = arith.constant dense<0.000000e+00> : vector<128x128xf32>
    %2 = tpu.matmul %0, %1, %cst {dimension_numbers = #tpu.dot_dimension_numbers<[1], [0], [0], [1], [0, 0, 1, 1], [], []>} : vector<128x144xbf16>, vector<144x128xbf16>, vector<128x128xf32> -> vector<128x128xf32>
    %c0_3 = arith.constant 0 : index
    %c0_4 = arith.constant 0 : index
    %3 = vector.load %arg3[%c0_3, %c0_4] : memref<1x128xf32, #tpu.memory_space<vmem>>, vector<1x128xf32>
    %4 = vector.broadcast %3 : vector<1x128xf32> to vector<128x128xf32>
    %5 = arith.addf %2, %4 : vector<128x128xf32>
    %cst_5 = arith.constant 0.000000e+00 : f32
    %6 = vector.broadcast %cst_5 : f32 to vector<128x128xf32>
    %7 = arith.maximumf %5, %6 : vector<128x128xf32>
    %c0_6 = arith.constant 0 : index
    %c0_7 = arith.constant 0 : index
    %8 = vector.load %arg4[%c0_6, %c0_7] : memref<128x128xf32, #tpu.memory_space<vmem>>, vector<128x128xf32>
    tpu.vector_store %arg4[%c0_6, %c0_7], %7 {strides = array<i32>} : memref<128x128xf32, #tpu.memory_space<vmem>>, vector<128x128xf32>,
    return
  }
  func.func @transform_0(%arg0: i32) -> (i32, i32) {
    %c0_i32 = arith.constant 0 : i32
    %c0_i32_0 = arith.constant 0 : i32
    return %arg0, %c0_i32 : i32, i32
  }
  func.func @transform_1(%arg0: i32) -> (i32, i32) {
    %c0_i32 = arith.constant 0 : i32
    %c0_i32_0 = arith.constant 0 : i32
    %c0_i32_1 = arith.constant 0 : i32
    return %c0_i32, %c0_i32_0 : i32, i32
  }
  func.func @transform_2(%arg0: i32) -> (i32, i32) {
    %c0_i32 = arith.constant 0 : i32
    %c0_i32_0 = arith.constant 0 : i32
    %c0_i32_1 = arith.constant 0 : i32
    return %c0_i32, %c0_i32_0 : i32, i32
  }
  func.func @transform_3(%arg0: i32) -> (i32, i32) {
    %c0_i32 = arith.constant 0 : i32
    %c0_i32_0 = arith.constant 0 : i32
    return %arg0, %c0_i32 : i32, i32
  }
}

module attributes {stable_mosaic.version = 11 : i64} {
  func.func @_mm_bias_act_kernel(%arg0: i32, %arg1: memref<16x8xbf16, #tpu.memory_space<vmem>>, %arg2: memref<8x128xbf16, #tpu.memory_space<vmem>>, %arg3: memref<1x128xf32, #tpu.memory_space<vmem>>, %arg4: memref<16x128xf32, #tpu.memory_space<vmem>>) attributes {dimension_semantics = [#tpu.dimension_semantics<parallel>], iteration_bounds = array<i64: 1>, scalar_prefetch = 0 : i64, scratch_operands = 0 : i64, tpu.core_type = #tpu.core_type<tc>, window_params = [{transform_indices = @transform_0, window_bounds = array<i64: 16, 8>}, {pipeline_mode = #tpu.pipeline_mode<synchronous>, transform_indices = @transform_1, window_bounds = array<i64: 8, 128>}, {pipeline_mode = #tpu.pipeline_mode<synchronous>, transform_indices = @transform_2, window_bounds = array<i64: 1, 128>}, {transform_indices = @transform_3, window_bounds = array<i64: 16, 128>}]} {
    %c0 = arith.constant 0 : index
    %c0_0 = arith.constant 0 : index
    %0 = vector.load %arg1[%c0, %c0_0] : memref<16x8xbf16, #tpu.memory_space<vmem>>, vector<16x8xbf16>
    %c0_1 = arith.constant 0 : index
    %c0_2 = arith.constant 0 : index
    %1 = vector.load %arg2[%c0_1, %c0_2] : memref<8x128xbf16, #tpu.memory_space<vmem>>, vector<8x128xbf16>
    %cst = arith.constant dense<0.000000e+00> : vector<16x128xf32>
    %2 = tpu.matmul %0, %1, %cst {dimension_numbers = #tpu.dot_dimension_numbers<[1], [0], [0], [1], [0, 0, 1, 1], [], []>} : vector<16x8xbf16>, vector<8x128xbf16>, vector<16x128xf32> -> vector<16x128xf32>
    %c0_3 = arith.constant 0 : index
    %c0_4 = arith.constant 0 : index
    %3 = vector.load %arg3[%c0_3, %c0_4] : memref<1x128xf32, #tpu.memory_space<vmem>>, vector<1x128xf32>
    %4 = vector.broadcast %3 : vector<1x128xf32> to vector<16x128xf32>
    %5 = arith.addf %2, %4 : vector<16x128xf32>
    %c0_5 = arith.constant 0 : index
    %c0_6 = arith.constant 0 : index
    %6 = vector.load %arg4[%c0_5, %c0_6] : memref<16x128xf32, #tpu.memory_space<vmem>>, vector<16x128xf32>
    tpu.vector_store %arg4[%c0_5, %c0_6], %5 {strides = array<i32>} : memref<16x128xf32, #tpu.memory_space<vmem>>, vector<16x128xf32>,
    return
  }
  func.func @transform_0(%arg0: i32) -> (i32, i32) {
    %c0_i32 = arith.constant 0 : i32
    %c0_i32_0 = arith.constant 0 : i32
    return %arg0, %c0_i32 : i32, i32
  }
  func.func @transform_1(%arg0: i32) -> (i32, i32) {
    %c0_i32 = arith.constant 0 : i32
    %c0_i32_0 = arith.constant 0 : i32
    %c0_i32_1 = arith.constant 0 : i32
    return %c0_i32, %c0_i32_0 : i32, i32
  }
  func.func @transform_2(%arg0: i32) -> (i32, i32) {
    %c0_i32 = arith.constant 0 : i32
    %c0_i32_0 = arith.constant 0 : i32
    %c0_i32_1 = arith.constant 0 : i32
    return %c0_i32, %c0_i32_0 : i32, i32
  }
  func.func @transform_3(%arg0: i32) -> (i32, i32) {
    %c0_i32 = arith.constant 0 : i32
    %c0_i32_0 = arith.constant 0 : i32
    return %arg0, %c0_i32 : i32, i32
  }
}

module attributes {stable_mosaic.version = 11 : i64} {
  func.func @_mm_bias_act_kernel(%arg0: i32, %arg1: memref<16x8xbf16, #tpu.memory_space<vmem>>, %arg2: memref<8x256xbf16, #tpu.memory_space<vmem>>, %arg3: memref<1x256xf32, #tpu.memory_space<vmem>>, %arg4: memref<16x256xf32, #tpu.memory_space<vmem>>) attributes {dimension_semantics = [#tpu.dimension_semantics<parallel>], iteration_bounds = array<i64: 1>, scalar_prefetch = 0 : i64, scratch_operands = 0 : i64, tpu.core_type = #tpu.core_type<tc>, window_params = [{transform_indices = @transform_0, window_bounds = array<i64: 16, 8>}, {pipeline_mode = #tpu.pipeline_mode<synchronous>, transform_indices = @transform_1, window_bounds = array<i64: 8, 256>}, {pipeline_mode = #tpu.pipeline_mode<synchronous>, transform_indices = @transform_2, window_bounds = array<i64: 1, 256>}, {transform_indices = @transform_3, window_bounds = array<i64: 16, 256>}]} {
    %c0 = arith.constant 0 : index
    %c0_0 = arith.constant 0 : index
    %0 = vector.load %arg1[%c0, %c0_0] : memref<16x8xbf16, #tpu.memory_space<vmem>>, vector<16x8xbf16>
    %c0_1 = arith.constant 0 : index
    %c0_2 = arith.constant 0 : index
    %1 = vector.load %arg2[%c0_1, %c0_2] : memref<8x256xbf16, #tpu.memory_space<vmem>>, vector<8x256xbf16>
    %cst = arith.constant dense<0.000000e+00> : vector<16x256xf32>
    %2 = tpu.matmul %0, %1, %cst {dimension_numbers = #tpu.dot_dimension_numbers<[1], [0], [0], [1], [0, 0, 1, 1], [], []>} : vector<16x8xbf16>, vector<8x256xbf16>, vector<16x256xf32> -> vector<16x256xf32>
    %c0_3 = arith.constant 0 : index
    %c0_4 = arith.constant 0 : index
    %3 = vector.load %arg3[%c0_3, %c0_4] : memref<1x256xf32, #tpu.memory_space<vmem>>, vector<1x256xf32>
    %4 = vector.broadcast %3 : vector<1x256xf32> to vector<16x256xf32>
    %5 = arith.addf %2, %4 : vector<16x256xf32>
    %c0_5 = arith.constant 0 : index
    %c0_6 = arith.constant 0 : index
    %6 = vector.load %arg4[%c0_5, %c0_6] : memref<16x256xf32, #tpu.memory_space<vmem>>, vector<16x256xf32>
    tpu.vector_store %arg4[%c0_5, %c0_6], %5 {strides = array<i32>} : memref<16x256xf32, #tpu.memory_space<vmem>>, vector<16x256xf32>,
    return
  }
  func.func @transform_0(%arg0: i32) -> (i32, i32) {
    %c0_i32 = arith.constant 0 : i32
    %c0_i32_0 = arith.constant 0 : i32
    return %arg0, %c0_i32 : i32, i32
  }
  func.func @transform_1(%arg0: i32) -> (i32, i32) {
    %c0_i32 = arith.constant 0 : i32
    %c0_i32_0 = arith.constant 0 : i32
    %c0_i32_1 = arith.constant 0 : i32
    return %c0_i32, %c0_i32_0 : i32, i32
  }
  func.func @transform_2(%arg0: i32) -> (i32, i32) {
    %c0_i32 = arith.constant 0 : i32
    %c0_i32_0 = arith.constant 0 : i32
    %c0_i32_1 = arith.constant 0 : i32
    return %c0_i32, %c0_i32_0 : i32, i32
  }
  func.func @transform_3(%arg0: i32) -> (i32, i32) {
    %c0_i32 = arith.constant 0 : i32
    %c0_i32_0 = arith.constant 0 : i32
    return %arg0, %c0_i32 : i32, i32
  }
}

module attributes {stable_mosaic.version = 11 : i64} {
  func.func @_mm_bias_act_kernel(%arg0: i32, %arg1: memref<128x144xbf16, #tpu.memory_space<vmem>>, %arg2: memref<144x128xbf16, #tpu.memory_space<vmem>>, %arg3: memref<1x128xf32, #tpu.memory_space<vmem>>, %arg4: memref<128x128xf32, #tpu.memory_space<vmem>>) attributes {dimension_semantics = [#tpu.dimension_semantics<parallel>], iteration_bounds = array<i64: 4>, scalar_prefetch = 0 : i64, scratch_operands = 0 : i64, tpu.core_type = #tpu.core_type<tc>, window_params = [{transform_indices = @transform_0, window_bounds = array<i64: 128, 144>}, {pipeline_mode = #tpu.pipeline_mode<synchronous>, transform_indices = @transform_1, window_bounds = array<i64: 144, 128>}, {pipeline_mode = #tpu.pipeline_mode<synchronous>, transform_indices = @transform_2, window_bounds = array<i64: 1, 128>}, {transform_indices = @transform_3, window_bounds = array<i64: 128, 128>}]} {
    %c0 = arith.constant 0 : index
    %c0_0 = arith.constant 0 : index
    %0 = vector.load %arg1[%c0, %c0_0] : memref<128x144xbf16, #tpu.memory_space<vmem>>, vector<128x144xbf16>
    %c0_1 = arith.constant 0 : index
    %c0_2 = arith.constant 0 : index
    %1 = vector.load %arg2[%c0_1, %c0_2] : memref<144x128xbf16, #tpu.memory_space<vmem>>, vector<144x128xbf16>
    %cst = arith.constant dense<0.000000e+00> : vector<128x128xf32>
    %2 = tpu.matmul %0, %1, %cst {dimension_numbers = #tpu.dot_dimension_numbers<[1], [0], [0], [1], [0, 0, 1, 1], [], []>} : vector<128x144xbf16>, vector<144x128xbf16>, vector<128x128xf32> -> vector<128x128xf32>
    %c0_3 = arith.constant 0 : index
    %c0_4 = arith.constant 0 : index
    %3 = vector.load %arg3[%c0_3, %c0_4] : memref<1x128xf32, #tpu.memory_space<vmem>>, vector<1x128xf32>
    %4 = vector.broadcast %3 : vector<1x128xf32> to vector<128x128xf32>
    %5 = arith.addf %2, %4 : vector<128x128xf32>
    %c0_5 = arith.constant 0 : index
    %c0_6 = arith.constant 0 : index
    %6 = vector.load %arg4[%c0_5, %c0_6] : memref<128x128xf32, #tpu.memory_space<vmem>>, vector<128x128xf32>
    tpu.vector_store %arg4[%c0_5, %c0_6], %5 {strides = array<i32>} : memref<128x128xf32, #tpu.memory_space<vmem>>, vector<128x128xf32>,
    return
  }
  func.func @transform_0(%arg0: i32) -> (i32, i32) {
    %c0_i32 = arith.constant 0 : i32
    %c0_i32_0 = arith.constant 0 : i32
    return %arg0, %c0_i32 : i32, i32
  }
  func.func @transform_1(%arg0: i32) -> (i32, i32) {
    %c0_i32 = arith.constant 0 : i32
    %c0_i32_0 = arith.constant 0 : i32
    %c0_i32_1 = arith.constant 0 : i32
    return %c0_i32, %c0_i32_0 : i32, i32
  }
  func.func @transform_2(%arg0: i32) -> (i32, i32) {
    %c0_i32 = arith.constant 0 : i32
    %c0_i32_0 = arith.constant 0 : i32
    %c0_i32_1 = arith.constant 0 : i32
    return %c0_i32, %c0_i32_0 : i32, i32
  }
  func.func @transform_3(%arg0: i32) -> (i32, i32) {
    %c0_i32 = arith.constant 0 : i32
    %c0_i32_0 = arith.constant 0 : i32
    return %arg0, %c0_i32 : i32, i32
  }
}

</mosaic_0001>

<llo_original>
// kernel: unet_forward.6
$region0: #{unet_forward.6}
  #allocation0 [shape = 'u32[]', space=smem, size = 0x4, offset = 0x4, fixed_abs, tag = 'smem constant byte address 0x4 - core index']
  #allocation1 [shape = 'u32[144,128]{1,0:T(1,128)}', space=vmem, size = 0x12000, scoped, tag = 'internal scratch']
  %s0 = inlined_call_operand.vmem [shape: bf16[512,36], index: 0, kind: input, shape index: {}]
  %s1 = inlined_call_operand.vmem [shape: bf16[36,128], index: 1, kind: input, shape index: {}]
  %s2 = inlined_call_operand.vmem [shape: f32[1,128], index: 2, kind: input, shape index: {}]
  %s3 = inlined_call_operand.vmem [shape: f32[512,128], index: 3, kind: output, shape index: {}]
  %s4 = sld [smem:[#allocation0]]
  $region45: #{unet_forward.6} parent=0
    _
  %s6 = ssub.s32 1, %s4
  %s7 = scalar_select 0, %s6, %s4
  loop: start=0, step=1, limit=6
  $region2: #{unet_forward.6} parent=0 // loop_pre_header
    _
  $region3: #{unet_forward.6} parent=0 // loop_header
    %s9 = sphi 0, %s13
    %p10 = scmp.ge.s32.totalorder %s9, 6
    %s19 = sphi 0, %s21
    %s22 = sphi 0, %s19
    %s23 = sphi 0, %s22
    %s39 = sphi 0, %s23
    %s43 = sphi 0, %s43
    %s45 = sphi 0, %s43
    %s46 = sphi 0, %s45
    %s60 = sphi 0, %s46
    %s64 = sphi 0, %s64
    %s66 = sphi 0, %s64
    %s67 = sphi 0, %s66
    %s81 = sphi 0, %s67
    %s87 = sphi 0, %s89
    %s90 = sphi 0, %s87
    %s91 = sphi 0, %s90
    %s107 = sphi 0, %s91
  $region4: #{unet_forward.6} parent=0 // loop_header_branch
    %12 = sbr.rel (%p10) target = $region8
  $region5: #{unet_forward.6} parent=0 // loop_body
    %s14 = ssub.s32 %s9, 1
    %s15 = ssub.s32 %s9, 2
    %s16 = sadd.s32 %s9, 1
    %s17 = ssub.s32 %s9, %s16
    %p18 = scmp.eq.s32.totalorder %s17, 0
    %s20 = sadd.s32 %s19, 1
    %s21 = scalar_select %p18, %s19, %s20
    %p24 = pneg %p18
    %p25 = scmp.eq.s32.totalorder %s9, 3
    %p26 = por %p24, %p25
    %p27 = scmp.ne.s32.totalorder %s19, %s22
    %p28 = scmp.eq.s32.totalorder %s9, 0
    %p29 = por %p27, %p28
    %p30 = scmp.ne.s32.totalorder %s19, %s22
    %p31 = scmp.eq.s32.totalorder %s14, 3
    %p32 = por %p30, %p31
    %p33 = scmp.ne.s32.totalorder %s22, %s23
    %p34 = scmp.eq.s32.totalorder %s14, 0
    %p35 = por %p33, %p34
    %p36 = scmp.ne.s32.totalorder %s22, %s23
    %p37 = scmp.eq.s32.totalorder %s15, 3
    %p38 = por %p36, %p37
    %p40 = scmp.ne.s32.totalorder %s23, %s39
    %p41 = scmp.eq.s32.totalorder %s15, 0
    %p42 = por %p40, %p41
    %s44 = sadd.s32 %s43, 1
    %p47 = scmp.eq.s32.totalorder %s9, 3
    %p48 = scmp.ne.s32.totalorder %s43, %s45
    %p49 = scmp.eq.s32.totalorder %s9, 0
    %p50 = por %p48, %p49
    %p51 = scmp.ne.s32.totalorder %s43, %s45
    %p52 = scmp.eq.s32.totalorder %s14, 3
    %p53 = por %p51, %p52
    %p54 = scmp.ne.s32.totalorder %s45, %s46
    %p55 = scmp.eq.s32.totalorder %s14, 0
    %p56 = por %p54, %p55
    %p57 = scmp.ne.s32.totalorder %s45, %s46
    %p58 = scmp.eq.s32.totalorder %s15, 3
    %p59 = por %p57, %p58
    %p61 = scmp.ne.s32.totalorder %s46, %s60
    %p62 = scmp.eq.s32.totalorder %s15, 0
    %p63 = por %p61, %p62
    %s65 = sadd.s32 %s64, 1
    %p68 = scmp.eq.s32.totalorder %s9, 3
    %p69 = scmp.ne.s32.totalorder %s64, %s66
    %p70 = scmp.eq.s32.totalorder %s9, 0
    %p71 = por %p69, %p70
    %p72 = scmp.ne.s32.totalorder %s64, %s66
    %p73 = scmp.eq.s32.totalorder %s14, 3
    %p74 = por %p72, %p73
    %p75 = scmp.ne.s32.totalorder %s66, %s67
    %p76 = scmp.eq.s32.totalorder %s14, 0
    %p77 = por %p75, %p76
    %p78 = scmp.ne.s32.totalorder %s66, %s67
    %p79 = scmp.eq.s32.totalorder %s15, 3
    %p80 = por %p78, %p79
    %p82 = scmp.ne.s32.totalorder %s67, %s81
    %p83 = scmp.eq.s32.totalorder %s15, 0
    %p84 = por %p82, %p83
    %s85 = ssub.s32 %s9, %s16
    %p86 = scmp.eq.s32.totalorder %s85, 0
    %s88 = sadd.s32 %s87, 1
    %s89 = scalar_select %p86, %s87, %s88
    %p92 = pneg %p86
    %p93 = scmp.eq.s32.totalorder %s9, 3
    %p94 = por %p92, %p93
    %p95 = scmp.ne.s32.totalorder %s87, %s90
    %p96 = scmp.eq.s32.totalorder %s9, 0
    %p97 = por %p95, %p96
    %p98 = scmp.ne.s32.totalorder %s87, %s90
    %p99 = scmp.eq.s32.totalorder %s14, 3
    %p100 = por %p98, %p99
    %p101 = scmp.ne.s32.totalorder %s90, %s91
    %p102 = scmp.eq.s32.totalorder %s14, 0
    %p103 = por %p101, %p102
    %p104 = scmp.ne.s32.totalorder %s90, %s91
    %p105 = scmp.eq.s32.totalorder %s15, 3
    %p106 = por %p104, %p105
    %p108 = scmp.ne.s32.totalorder %s91, %s107
    %p109 = scmp.eq.s32.totalorder %s15, 0
    %p110 = por %p108, %p109
    %p111 = scmp.le.s32.totalorder 1, %s9
    %p112 = scmp.lt.s32.totalorder %s9, 5
    %p113 = pnand %p111, %p112
    %p114 = pneg %p113
    // Predicated region
    $region9: #{unet_forward.6} parent=5 // pred_check
      _
    $region10: #{unet_forward.6} parent=5 // pred_check_branch
      %116 = sbr.rel (%p113) target = $region12
    $region11: #{unet_forward.6} parent=5 // pred_region
      %s117 = ssub.s32 %s9, 1
      // Predicated region
      $region13: #{unet_forward.6} parent=11 // pred_check
        %p118 = pneg %p56
      $region14: #{unet_forward.6} parent=11 // pred_check_branch
        %120 = sbr.rel (%p118) target = $region16
      $region15: #{unet_forward.6} parent=11 // pred_region
        _
      $region16: #{unet_forward.6} parent=11 // pred_fallthru
        _
      // Predicated region
      $region17: #{unet_forward.6} parent=11 // pred_check
        %p121 = pneg %p77
      $region18: #{unet_forward.6} parent=11 // pred_check_branch
        %123 = sbr.rel (%p121) target = $region20
      $region19: #{unet_forward.6} parent=11 // pred_region
        _
      $region20: #{unet_forward.6} parent=11 // pred_fallthru
        _
    $region12: #{unet_forward.6} parent=5 // pred_fallthru
      _
    %p124 = scmp.lt.s32.totalorder %s9, 4
    // Predicated region
    $region21: #{unet_forward.6} parent=5 // pred_check
      %p125 = pneg %p124
    $region22: #{unet_forward.6} parent=5 // pred_check_branch
      %127 = sbr.rel (%p125) target = $region24
    $region23: #{unet_forward.6} parent=5 // pred_region
      // Predicated region
      $region25: #{unet_forward.6} parent=23 // pred_check
        %p128 = pneg %p29
      $region26: #{unet_forward.6} parent=23 // pred_check_branch
        %130 = sbr.rel (%p128) target = $region28
      $region27: #{unet_forward.6} parent=23 // pred_region
        %s131 = smul.u32 16, %s9
        %p132 = scmp.lt.s32.totalorder %s131, 63
        %s133 = scalar_select %p132, %s131, 63
        %s134 = smul.addr %s133, 4
        %s135 = scalar_lea.vmem %s0, %s134
        %s136 = smul.u32 16, %s9
      $region28: #{unet_forward.6} parent=23 // pred_fallthru
        _
    $region24: #{unet_forward.6} parent=5 // pred_fallthru
      _
    %p137 = scmp.le.s32.totalorder 1, %s9
    %p138 = scmp.lt.s32.totalorder %s9, 5
    %p139 = pnand %p137, %p138
    %p140 = pneg %p139
    // Predicated region
    $region29: #{unet_forward.6} parent=5 // pred_check
      _
    $region30: #{unet_forward.6} parent=5 // pred_check_branch
      %142 = sbr.rel (%p139) target = $region32
    $region31: #{unet_forward.6} parent=5 // pred_region
      %s143 = ssub.s32 %s9, 1
      %s144 = smul.u32 16, %s14
      %p145 = scmp.lt.s32.totalorder %s144, 63
      %s146 = scalar_select %p145, %s144, 63
      %s147 = smul.addr %s146, 4
      %s148 = scalar_lea.vmem %s0, %s147
      %p149 = pneg %p35
      %p150 = pneg %p32
      %p151 = pneg %p56
      %p152 = pneg %p53
      %p153 = pneg %p77
      %p154 = pneg %p74
      %p155 = pneg %p103
      %p156 = pneg %p100
      %s157 = smul.u32 16, %s14
      %p158 = scmp.lt.s32.totalorder %s157, 63
      %s159 = scalar_select %p158, %s157, 63
      %s160 = smul.addr %s159, 8
      %s161 = scalar_lea.vmem %s3, %s160
      %s162 = smul.u32 16, %s14
      %p163 = scmp.lt.s32.totalorder %s162, 63
      %s164 = scalar_select %p163, %s162, 63
      %s165 = smul.addr %s164, 4
      %s166 = scalar_lea.vmem %s0, %s165
      %s167 = smul.u32 16, %s14
      %s168 = smul.u32 16, %s14
      %p169 = scmp.lt.s32.totalorder %s168, 63
      %s170 = scalar_select %p169, %s168, 63
      %s171 = smul.addr %s170, 8
      %s172 = scalar_lea.vmem %s3, %s171
      %s173 = smul.u32 16, %s14
      %v175 = vld [vmem:[%s166] sm:$0xf]
      %v176 = vld [vmem:[%s166 + $0x4] sm:$0xf]
      %v177 = vld [vmem:[%s166 + $0x8] sm:$0xf]
      %v178 = vld [vmem:[%s166 + $0xc] sm:$0xf]
      %v179 = vld [vmem:[%s166 + $0x10] sm:$0xf]
      %v180 = vld [vmem:[%s166 + $0x14] sm:$0xf]
      %v181 = vld [vmem:[%s166 + $0x18] sm:$0xf]
      %v182 = vld [vmem:[%s166 + $0x1c] sm:$0xf]
      %v183 = vld [vmem:[%s166 + $0x20] sm:$0xf]
      %v184 = vld [vmem:[%s166 + $0x24] sm:$0xf]
      %v185 = vld [vmem:[%s166 + $0x28] sm:$0xf]
      %v186 = vld [vmem:[%s166 + $0x2c] sm:$0xf]
      %v187 = vld [vmem:[%s166 + $0x30] sm:$0xf]
      %v188 = vld [vmem:[%s166 + $0x34] sm:$0xf]
      %v189 = vld [vmem:[%s166 + $0x38] sm:$0xf]
      %v190 = vld [vmem:[%s166 + $0x3c] sm:$0xf]
      %v191 = vld [vmem:[%s1] sm:$0xf]
      %v192 = vld [vmem:[%s1 + $0x4] sm:$0xf]
      %v193 = vld [vmem:[%s1 + $0x8] sm:$0xf]
      %v194 = vld [vmem:[%s1 + $0xc] sm:$0xf]
      %v195 = vld [vmem:[%s1 + $0x10] sm:$0x3]
      %v196 = vld [vmem:[%s2] sm:$0x1]
      %v198 = vlaneseq
      %v199 = vshrl.u32 %v198, 7
      %v200 = vsub.s32 0, %v199
      %v201 = vrot.slane %v196, %v200
      %v219 = vunpack.c.l.b16 %v175
      %v220 = vunpack.c.l.b16 %v176
      %v221 = vunpack.c.l.b16 %v177
      %v222 = vunpack.c.l.b16 %v178
      %v223 = vunpack.c.l.b16 %v179
      %v224 = vunpack.c.l.b16 %v180
      %v225 = vunpack.c.l.b16 %v181
      %v226 = vunpack.c.l.b16 %v182
      %v227 = vunpack.c.l.b16 %v183
      %v228 = vunpack.c.l.b16 %v184
      %v229 = vunpack.c.l.b16 %v185
      %v230 = vunpack.c.l.b16 %v186
      %v231 = vunpack.c.l.b16 %v187
      %v232 = vunpack.c.l.b16 %v188
      %v233 = vunpack.c.l.b16 %v189
      %v234 = vunpack.c.l.b16 %v190
      %v235 = vpack.c.b16 %v220, %v219
      %v236 = vpack.c.b16 %v222, %v221
      %v237 = vpack.c.b16 %v224, %v223
      %v238 = vpack.c.b16 %v226, %v225
      %v239 = vpack.c.b16 %v228, %v227
      %v240 = vpack.c.b16 %v230, %v229
      %v241 = vpack.c.b16 %v232, %v231
      %v242 = vpack.c.b16 %v234, %v233
      %v248 = vunpack.c.l.b16 %v191
      %v249 = vunpack.c.l.b16 %v192
      %v250 = vunpack.c.l.b16 %v193
      %v251 = vunpack.c.l.b16 %v194
      %v252 = vunpack.c.l.b16 %v195
      %v253 = vpack.c.b16 %v249, %v248
      %v254 = vpack.c.b16 %v251, %v250
      %v255 = vpack.c.b16 %v252, %v252
      %vm258 = vcmask 293888
      %v260 = vsel %vm258, %v235, 0
      %v263 = vsel %vm258, %v236, 0
      %v266 = vsel %vm258, %v237, 0
      %v269 = vsel %vm258, %v238, 0
      %v272 = vsel %vm258, %v239, 0
      %v275 = vsel %vm258, %v240, 0
      %v278 = vsel %vm258, %v241, 0
      %v281 = vsel %vm258, %v242, 0
      %vm283 = vcmask 1041408
      %v285 = vsel %vm283, %v255, 0
      %287 = vmatprep.subr.bf16.mxu0 0
      %288 = vmatpush1.bf16.msra.mxu0 %v253
      %289 = vmatprep.subr.bf16.mxu0 0
      %290 = vmatpush1.bf16.msra.mxu0 %v254
      %291 = vmatprep.subr.bf16.mxu0 0
      %292 = vmatpush1.bf16.msra.mxu0 %v285
      %293 = vmatprep.subr.bf16.mxu0 0
      %294 = vmatpush1.bf16.msra.mxu0 0
      %295 = vmatprep.subr.bf16.mxu0 0
      %296 = vmatpush1.bf16.msra.mxu0 0
      %297 = vmatprep.subr.bf16.mxu0 0
      %298 = vmatpush1.bf16.msra.mxu0 0
      %299 = vmatprep.subr.bf16.mxu0 0
      %300 = vmatpush1.bf16.msra.mxu0 0
      %301 = vmatprep.subr.bf16.mxu0 0
      %302 = vmatpush1.bf16.msra.mxu0 0
      %303 = vmatprep.subr.bf16.mxu0 0
      %304 = vmatpush1.bf16.msra.mxu0 0
      %305 = vmatprep.subr.bf16.mxu0 0
      %306 = vmatpush1.bf16.msra.mxu0 0
      %307 = vmatprep.subr.bf16.mxu0 0
      %308 = vmatpush1.bf16.msra.mxu0 0
      %309 = vmatprep.subr.bf16.mxu0 0
      %310 = vmatpush1.bf16.msra.mxu0 0
      %311 = vmatprep.subr.bf16.mxu0 0
      %312 = vmatpush1.bf16.msra.mxu0 0
      %313 = vmatprep.subr.bf16.mxu0 0
      %314 = vmatpush1.bf16.msra.mxu0 0
      %315 = vmatprep.subr.bf16.mxu0 0
      %316 = vmatpush1.bf16.msra.mxu0 0
      %317 = vmatprep.subr.bf16.mxu0 0
      %318 = vmatpush1.bf16.msra.mxu0 0
      %319 = vmatprep.mubr.bf16.mxu0 0
      %320 = vmatmul.mubr.bf16.gmra.mrb[0].mxu0 %v260
      %v321 = vpop.f32.mrb[0].mxu0
      %v322 = vadd.f32 %v201, %v321
      %v323 = vpop.f32.mrb[0].mxu0
      %v324 = vpop.f32.mrb[0].mxu0
      %v325 = vadd.f32 %v201, %v324
      %v326 = vpop.f32.mrb[0].mxu0
      %327 = vmatprep.mubr.bf16.mxu0 0
      %328 = vmatmul.mubr.bf16.gmra.mrb[0].mxu0 %v263
      %v329 = vpop.f32.mrb[0].mxu0
      %v330 = vadd.f32 %v201, %v329
      %v331 = vpop.f32.mrb[0].mxu0
      %v332 = vpop.f32.mrb[0].mxu0
      %v333 = vadd.f32 %v201, %v332
      %v334 = vpop.f32.mrb[0].mxu0
      %335 = vmatprep.mubr.bf16.mxu0 0
      %336 = vmatmul.mubr.bf16.gmra.mrb[0].mxu0 %v266
      %v337 = vpop.f32.mrb[0].mxu0
      %v338 = vadd.f32 %v201, %v337
      %v339 = vpop.f32.mrb[0].mxu0
      %v340 = vpop.f32.mrb[0].mxu0
      %v341 = vadd.f32 %v201, %v340
      %v342 = vpop.f32.mrb[0].mxu0
      %343 = vmatprep.mubr.bf16.mxu0 0
      %344 = vmatmul.mubr.bf16.gmra.mrb[0].mxu0 %v269
      %v345 = vpop.f32.mrb[0].mxu0
      %v346 = vadd.f32 %v201, %v345
      %v347 = vpop.f32.mrb[0].mxu0
      %v348 = vpop.f32.mrb[0].mxu0
      %v349 = vadd.f32 %v201, %v348
      %v350 = vpop.f32.mrb[0].mxu0
      %351 = vmatprep.mubr.bf16.mxu0 0
      %352 = vmatmul.mubr.bf16.gmra.mrb[0].mxu0 %v272
      %v353 = vpop.f32.mrb[0].mxu0
      %v354 = vadd.f32 %v201, %v353
      %v355 = vpop.f32.mrb[0].mxu0
      %v356 = vpop.f32.mrb[0].mxu0
      %v357 = vadd.f32 %v201, %v356
      %v358 = vpop.f32.mrb[0].mxu0
      %359 = vmatprep.mubr.bf16.mxu0 0
      %360 = vmatmul.mubr.bf16.gmra.mrb[0].mxu0 %v275
      %v361 = vpop.f32.mrb[0].mxu0
      %v362 = vadd.f32 %v201, %v361
      %v363 = vpop.f32.mrb[0].mxu0
      %v364 = vpop.f32.mrb[0].mxu0
      %v365 = vadd.f32 %v201, %v364
      %v366 = vpop.f32.mrb[0].mxu0
      %367 = vmatprep.mubr.bf16.mxu0 0
      %368 = vmatmul.mubr.bf16.gmra.mrb[0].mxu0 %v278
      %v369 = vpop.f32.mrb[0].mxu0
      %v370 = vadd.f32 %v201, %v369
      %v371 = vpop.f32.mrb[0].mxu0
      %v372 = vpop.f32.mrb[0].mxu0
      %v373 = vadd.f32 %v201, %v372
      %v374 = vpop.f32.mrb[0].mxu0
      %375 = vmatprep.mubr.bf16.mxu0 0
      %376 = vmatmul.mubr.bf16.gmra.mrb[0].mxu0 %v281
      %v377 = vpop.f32.mrb[0].mxu0
      %v378 = vadd.f32 %v201, %v377
      %v379 = vpop.f32.mrb[0].mxu0
      %v380 = vpop.f32.mrb[0].mxu0
      %v381 = vadd.f32 %v201, %v380
      %v382 = vpop.f32.mrb[0].mxu0
      %383 = vdwg.mxu0
      %v384 = vmax.f32 %v322, 0.0
      %v385 = vmax.f32 %v325, 0.0
      %v386 = vmax.f32 %v330, 0.0
      %v387 = vmax.f32 %v333, 0.0
      %v388 = vmax.f32 %v338, 0.0
      %v389 = vmax.f32 %v341, 0.0
      %v390 = vmax.f32 %v346, 0.0
      %v391 = vmax.f32 %v349, 0.0
      %v392 = vmax.f32 %v354, 0.0
      %v393 = vmax.f32 %v357, 0.0
      %v394 = vmax.f32 %v362, 0.0
      %v395 = vmax.f32 %v365, 0.0
      %v396 = vmax.f32 %v370, 0.0
      %v397 = vmax.f32 %v373, 0.0
      %v398 = vmax.f32 %v378, 0.0
      %v399 = vmax.f32 %v381, 0.0
      %400 = vst [vmem:[%s172] sm:$0xff] %v384
      %401 = vst [vmem:[%s172 + $0x8] sm:$0xff] %v385
      %402 = vst [vmem:[%s172 + $0x10] sm:$0xff] %v386
      %403 = vst [vmem:[%s172 + $0x18] sm:$0xff] %v387
      %404 = vst [vmem:[%s172 + $0x20] sm:$0xff] %v388
      %405 = vst [vmem:[%s172 + $0x28] sm:$0xff] %v389
      %406 = vst [vmem:[%s172 + $0x30] sm:$0xff] %v390
      %407 = vst [vmem:[%s172 + $0x38] sm:$0xff] %v391
      %408 = vst [vmem:[%s172 + $0x40] sm:$0xff] %v392
      %409 = vst [vmem:[%s172 + $0x48] sm:$0xff] %v393
      %410 = vst [vmem:[%s172 + $0x50] sm:$0xff] %v394
      %411 = vst [vmem:[%s172 + $0x58] sm:$0xff] %v395
      %412 = vst [vmem:[%s172 + $0x60] sm:$0xff] %v396
      %413 = vst [vmem:[%s172 + $0x68] sm:$0xff] %v397
      %414 = vst [vmem:[%s172 + $0x70] sm:$0xff] %v398
      %415 = vst [vmem:[%s172 + $0x78] sm:$0xff] %v399
      %s416 = smul.u32 16, %s14
      %p417 = scmp.lt.s32.totalorder %s416, 63
      %s418 = scalar_select %p417, %s416, 63
      %s419 = smul.addr %s418, 8
      %s420 = scalar_lea.vmem %s3, %s419
      // Predicated region
      $region33: #{unet_forward.6} parent=31 // pred_check
        %p421 = pneg %p100
      $region34: #{unet_forward.6} parent=31 // pred_check_branch
        %423 = sbr.rel (%p421) target = $region36
      $region35: #{unet_forward.6} parent=31 // pred_region
        %s424 = smul.u32 16, %s14
      $region36: #{unet_forward.6} parent=31 // pred_fallthru
        _
    $region32: #{unet_forward.6} parent=5 // pred_fallthru
      _
    %p425 = scmp.le.s32.totalorder 2, %s9
    // Predicated region
    $region37: #{unet_forward.6} parent=5 // pred_check
      %p426 = pneg %p425
    $region38: #{unet_forward.6} parent=5 // pred_check_branch
      %428 = sbr.rel (%p426) target = $region40
    $region39: #{unet_forward.6} parent=5 // pred_region
      %s429 = ssub.s32 %s9, 2
      // Predicated region
      $region41: #{unet_forward.6} parent=39 // pred_check
        %p430 = pneg %p106
      $region42: #{unet_forward.6} parent=39 // pred_check_branch
        %432 = sbr.rel (%p430) target = $region44
      $region43: #{unet_forward.6} parent=39 // pred_region
        %s433 = smul.u32 16, %s15
        %p434 = scmp.lt.s32.totalorder %s433, 63
        %s435 = scalar_select %p434, %s433, 63
        %s436 = smul.addr %s435, 8
        %s437 = scalar_lea.vmem %s3, %s436
      $region44: #{unet_forward.6} parent=39 // pred_fallthru
        _
    $region40: #{unet_forward.6} parent=5 // pred_fallthru
      _
  $region6: #{unet_forward.6} parent=0 // loop_footer
    %s13 = sadd.s32 1, %s9
  $region7: #{unet_forward.6} parent=0 // loop_footer_branch
    %8 = sbr.rel target = $region3
  $region8: #{unet_forward.6} parent=0 // loop_exit
    _

// kernel: unet_forward.7
$region0: #{unet_forward.7}
  #allocation0 [shape = 'u32[]', space=smem, size = 0x4, offset = 0x4, fixed_abs, tag = 'smem constant byte address 0x4 - core index']
  #allocation1 [shape = 'u32[144,128]{1,0:T(1,128)}', space=vmem, size = 0x12000, scoped, tag = 'internal scratch']
  %s0 = inlined_call_operand.vmem [shape: bf16[128,72], index: 0, kind: input, shape index: {}]
  %s1 = inlined_call_operand.vmem [shape: bf16[72,128], index: 1, kind: input, shape index: {}]
  %s2 = inlined_call_operand.vmem [shape: f32[1,128], index: 2, kind: input, shape index: {}]
  %s3 = inlined_call_operand.vmem [shape: f32[128,128], index: 3, kind: output, shape index: {}]
  %s4 = sld [smem:[#allocation0]]
  $region22: #{unet_forward.7} parent=0
    _
  %s6 = ssub.s32 1, %s4
  %s7 = scalar_select 0, %s6, %s4
  // Predicated region
  $region2: #{unet_forward.7} parent=0 // pred_check
    _
  $region3: #{unet_forward.7} parent=0 // pred_check_branch
    %9 = sbr.rel (0) target = $region5
  $region4: #{unet_forward.7} parent=0 // pred_region
    _
  $region5: #{unet_forward.7} parent=0 // pred_fallthru
    _
  // Predicated region
  $region6: #{unet_forward.7} parent=0 // pred_check
    _
  $region7: #{unet_forward.7} parent=0 // pred_check_branch
    %11 = sbr.rel (0) target = $region9
  $region8: #{unet_forward.7} parent=0 // pred_region
    _
  $region9: #{unet_forward.7} parent=0 // pred_fallthru
    _
  // Predicated region
  $region10: #{unet_forward.7} parent=0 // pred_check
    _
  $region11: #{unet_forward.7} parent=0 // pred_check_branch
    %13 = sbr.rel (0) target = $region13
  $region12: #{unet_forward.7} parent=0 // pred_region
    _
  $region13: #{unet_forward.7} parent=0 // pred_fallthru
    _
  %v15 = vld [vmem:[%s0] sm:$0xf]
  %v16 = vld [vmem:[%s0 + $0x4] sm:$0xf]
  %v17 = vld [vmem:[%s0 + $0x8] sm:$0xf]
  %v18 = vld [vmem:[%s0 + $0xc] sm:$0xf]
  %v19 = vld [vmem:[%s0 + $0x10] sm:$0xf]
  %v20 = vld [vmem:[%s0 + $0x14] sm:$0xf]
  %v21 = vld [vmem:[%s0 + $0x18] sm:$0xf]
  %v22 = vld [vmem:[%s0 + $0x1c] sm:$0xf]
  %v23 = vld [vmem:[%s0 + $0x20] sm:$0xf]
  %v24 = vld [vmem:[%s0 + $0x24] sm:$0xf]
  %v25 = vld [vmem:[%s0 + $0x28] sm:$0xf]
  %v26 = vld [vmem:[%s0 + $0x2c] sm:$0xf]
  %v27 = vld [vmem:[%s0 + $0x30] sm:$0xf]
  %v28 = vld [vmem:[%s0 + $0x34] sm:$0xf]
  %v29 = vld [vmem:[%s0 + $0x38] sm:$0xf]
  %v30 = vld [vmem:[%s0 + $0x3c] sm:$0xf]
  %v31 = vld [vmem:[%s1] sm:$0xf]
  %v32 = vld [vmem:[%s1 + $0x4] sm:$0xf]
  %v33 = vld [vmem:[%s1 + $0x8] sm:$0xf]
  %v34 = vld [vmem:[%s1 + $0xc] sm:$0xf]
  %v35 = vld [vmem:[%s1 + $0x10] sm:$0xf]
  %v36 = vld [vmem:[%s1 + $0x14] sm:$0xf]
  %v37 = vld [vmem:[%s1 + $0x18] sm:$0xf]
  %v38 = vld [vmem:[%s1 + $0x1c] sm:$0xf]
  %v39 = vld [vmem:[%s1 + $0x20] sm:$0xf]
  %v40 = vld [vmem:[%s2] sm:$0x1]
  %v42 = vlaneseq
  %v43 = vshrl.u32 %v42, 7
  %v44 = vsub.s32 0, %v43
  %v45 = vrot.slane %v40, %v44
  %v63 = vunpack.c.l.b16 %v15
  %v64 = vunpack.c.l.b16 %v16
  %v65 = vunpack.c.l.b16 %v17
  %v66 = vunpack.c.l.b16 %v18
  %v67 = vunpack.c.l.b16 %v19
  %v68 = vunpack.c.l.b16 %v20
  %v69 = vunpack.c.l.b16 %v21
  %v70 = vunpack.c.l.b16 %v22
  %v71 = vunpack.c.l.b16 %v23
  %v72 = vunpack.c.l.b16 %v24
  %v73 = vunpack.c.l.b16 %v25
  %v74 = vunpack.c.l.b16 %v26
  %v75 = vunpack.c.l.b16 %v27
  %v76 = vunpack.c.l.b16 %v28
  %v77 = vunpack.c.l.b16 %v29
  %v78 = vunpack.c.l.b16 %v30
  %v79 = vpack.c.b16 %v64, %v63
  %v80 = vpack.c.b16 %v66, %v65
  %v81 = vpack.c.b16 %v68, %v67
  %v82 = vpack.c.b16 %v70, %v69
  %v83 = vpack.c.b16 %v72, %v71
  %v84 = vpack.c.b16 %v74, %v73
  %v85 = vpack.c.b16 %v76, %v75
  %v86 = vpack.c.b16 %v78, %v77
  %v96 = vunpack.c.l.b16 %v31
  %v97 = vunpack.c.l.b16 %v32
  %v98 = vunpack.c.l.b16 %v33
  %v99 = vunpack.c.l.b16 %v34
  %v100 = vunpack.c.l.b16 %v35
  %v101 = vunpack.c.l.b16 %v36
  %v102 = vunpack.c.l.b16 %v37
  %v103 = vunpack.c.l.b16 %v38
  %v104 = vunpack.c.l.b16 %v39
  %v105 = vpack.c.b16 %v97, %v96
  %v106 = vpack.c.b16 %v99, %v98
  %v107 = vpack.c.b16 %v101, %v100
  %v108 = vpack.c.b16 %v103, %v102
  %v109 = vpack.c.b16 %v104, %v104
  %vm114 = vcmask 588800
  %v116 = vsel %vm114, %v79, 0
  %v119 = vsel %vm114, %v80, 0
  %v122 = vsel %vm114, %v81, 0
  %v125 = vsel %vm114, %v82, 0
  %v128 = vsel %vm114, %v83, 0
  %v131 = vsel %vm114, %v84, 0
  %v134 = vsel %vm114, %v85, 0
  %v137 = vsel %vm114, %v86, 0
  %vm139 = vcmask 1043456
  %v141 = vsel %vm139, %v109, 0
  %143 = vmatprep.subr.bf16.mxu0 0
  %144 = vmatpush1.bf16.msra.mxu0 %v105
  %145 = vmatprep.subr.bf16.mxu0 0
  %146 = vmatpush1.bf16.msra.mxu0 %v106
  %147 = vmatprep.subr.bf16.mxu0 0
  %148 = vmatpush1.bf16.msra.mxu0 %v107
  %149 = vmatprep.subr.bf16.mxu0 0
  %150 = vmatpush1.bf16.msra.mxu0 %v108
  %151 = vmatprep.subr.bf16.mxu0 0
  %152 = vmatpush1.bf16.msra.mxu0 %v141
  %153 = vmatprep.subr.bf16.mxu0 0
  %154 = vmatpush1.bf16.msra.mxu0 0
  %155 = vmatprep.subr.bf16.mxu0 0
  %156 = vmatpush1.bf16.msra.mxu0 0
  %157 = vmatprep.subr.bf16.mxu0 0
  %158 = vmatpush1.bf16.msra.mxu0 0
  %159 = vmatprep.subr.bf16.mxu0 0
  %160 = vmatpush1.bf16.msra.mxu0 0
  %161 = vmatprep.subr.bf16.mxu0 0
  %162 = vmatpush1.bf16.msra.mxu0 0
  %163 = vmatprep.subr.bf16.mxu0 0
  %164 = vmatpush1.bf16.msra.mxu0 0
  %165 = vmatprep.subr.bf16.mxu0 0
  %166 = vmatpush1.bf16.msra.mxu0 0
  %167 = vmatprep.subr.bf16.mxu0 0
  %168 = vmatpush1.bf16.msra.mxu0 0
  %169 = vmatprep.subr.bf16.mxu0 0
  %170 = vmatpush1.bf16.msra.mxu0 0
  %171 = vmatprep.subr.bf16.mxu0 0
  %172 = vmatpush1.bf16.msra.mxu0 0
  %173 = vmatprep.subr.bf16.mxu0 0
  %174 = vmatpush1.bf16.msra.mxu0 0
  %175 = vmatprep.mubr.bf16.mxu0 0
  %176 = vmatmul.mubr.bf16.gmra.mrb[0].mxu0 %v116
  %v177 = vpop.f32.mrb[0].mxu0
  %v178 = vadd.f32 %v45, %v177
  %v179 = vpop.f32.mrb[0].mxu0
  %v180 = vpop.f32.mrb[0].mxu0
  %v181 = vadd.f32 %v45, %v180
  %v182 = vpop.f32.mrb[0].mxu0
  %183 = vmatprep.mubr.bf16.mxu0 0
  %184 = vmatmul.mubr.bf16.gmra.mrb[0].mxu0 %v119
  %v185 = vpop.f32.mrb[0].mxu0
  %v186 = vadd.f32 %v45, %v185
  %v187 = vpop.f32.mrb[0].mxu0
  %v188 = vpop.f32.mrb[0].mxu0
  %v189 = vadd.f32 %v45, %v188
  %v190 = vpop.f32.mrb[0].mxu0
  %191 = vmatprep.mubr.bf16.mxu0 0
  %192 = vmatmul.mubr.bf16.gmra.mrb[0].mxu0 %v122
  %v193 = vpop.f32.mrb[0].mxu0
  %v194 = vadd.f32 %v45, %v193
  %v195 = vpop.f32.mrb[0].mxu0
  %v196 = vpop.f32.mrb[0].mxu0
  %v197 = vadd.f32 %v45, %v196
  %v198 = vpop.f32.mrb[0].mxu0
  %199 = vmatprep.mubr.bf16.mxu0 0
  %200 = vmatmul.mubr.bf16.gmra.mrb[0].mxu0 %v125
  %v201 = vpop.f32.mrb[0].mxu0
  %v202 = vadd.f32 %v45, %v201
  %v203 = vpop.f32.mrb[0].mxu0
  %v204 = vpop.f32.mrb[0].mxu0
  %v205 = vadd.f32 %v45, %v204
  %v206 = vpop.f32.mrb[0].mxu0
  %207 = vmatprep.mubr.bf16.mxu0 0
  %208 = vmatmul.mubr.bf16.gmra.mrb[0].mxu0 %v128
  %v209 = vpop.f32.mrb[0].mxu0
  %v210 = vadd.f32 %v45, %v209
  %v211 = vpop.f32.mrb[0].mxu0
  %v212 = vpop.f32.mrb[0].mxu0
  %v213 = vadd.f32 %v45, %v212
  %v214 = vpop.f32.mrb[0].mxu0
  %215 = vmatprep.mubr.bf16.mxu0 0
  %216 = vmatmul.mubr.bf16.gmra.mrb[0].mxu0 %v131
  %v217 = vpop.f32.mrb[0].mxu0
  %v218 = vadd.f32 %v45, %v217
  %v219 = vpop.f32.mrb[0].mxu0
  %v220 = vpop.f32.mrb[0].mxu0
  %v221 = vadd.f32 %v45, %v220
  %v222 = vpop.f32.mrb[0].mxu0
  %223 = vmatprep.mubr.bf16.mxu0 0
  %224 = vmatmul.mubr.bf16.gmra.mrb[0].mxu0 %v134
  %v225 = vpop.f32.mrb[0].mxu0
  %v226 = vadd.f32 %v45, %v225
  %v227 = vpop.f32.mrb[0].mxu0
  %v228 = vpop.f32.mrb[0].mxu0
  %v229 = vadd.f32 %v45, %v228
  %v230 = vpop.f32.mrb[0].mxu0
  %231 = vmatprep.mubr.bf16.mxu0 0
  %232 = vmatmul.mubr.bf16.gmra.mrb[0].mxu0 %v137
  %v233 = vpop.f32.mrb[0].mxu0
  %v234 = vadd.f32 %v45, %v233
  %v235 = vpop.f32.mrb[0].mxu0
  %v236 = vpop.f32.mrb[0].mxu0
  %v237 = vadd.f32 %v45, %v236
  %v238 = vpop.f32.mrb[0].mxu0
  %239 = vdwg.mxu0
  %v240 = vmax.f32 %v178, 0.0
  %v241 = vmax.f32 %v181, 0.0
  %v242 = vmax.f32 %v186, 0.0
  %v243 = vmax.f32 %v189, 0.0
  %v244 = vmax.f32 %v194, 0.0
  %v245 = vmax.f32 %v197, 0.0
  %v246 = vmax.f32 %v202, 0.0
  %v247 = vmax.f32 %v205, 0.0
  %v248 = vmax.f32 %v210, 0.0
  %v249 = vmax.f32 %v213, 0.0
  %v250 = vmax.f32 %v218, 0.0
  %v251 = vmax.f32 %v221, 0.0
  %v252 = vmax.f32 %v226, 0.0
  %v253 = vmax.f32 %v229, 0.0
  %v254 = vmax.f32 %v234, 0.0
  %v255 = vmax.f32 %v237, 0.0
  %256 = vst [vmem:[%s3] sm:$0xff] %v240
  %257 = vst [vmem:[%s3 + $0x8] sm:$0xff] %v241
  %258 = vst [vmem:[%s3 + $0x10] sm:$0xff] %v242
  %259 = vst [vmem:[%s3 + $0x18] sm:$0xff] %v243
  %260 = vst [vmem:[%s3 + $0x20] sm:$0xff] %v244
  %261 = vst [vmem:[%s3 + $0x28] sm:$0xff] %v245
  %262 = vst [vmem:[%s3 + $0x30] sm:$0xff] %v246
  %263 = vst [vmem:[%s3 + $0x38] sm:$0xff] %v247
  %264 = vst [vmem:[%s3 + $0x40] sm:$0xff] %v248
  %265 = vst [vmem:[%s3 + $0x48] sm:$0xff] %v249
  %266 = vst [vmem:[%s3 + $0x50] sm:$0xff] %v250
  %267 = vst [vmem:[%s3 + $0x58] sm:$0xff] %v251
  %268 = vst [vmem:[%s3 + $0x60] sm:$0xff] %v252
  %269 = vst [vmem:[%s3 + $0x68] sm:$0xff] %v253
  %270 = vst [vmem:[%s3 + $0x70] sm:$0xff] %v254
  %271 = vst [vmem:[%s3 + $0x78] sm:$0xff] %v255
  // Predicated region
  $region14: #{unet_forward.7} parent=0 // pred_check
    _
  $region15: #{unet_forward.7} parent=0 // pred_check_branch
    %273 = sbr.rel (0) target = $region17
  $region16: #{unet_forward.7} parent=0 // pred_region
    _
  $region17: #{unet_forward.7} parent=0 // pred_fallthru
    _
  // Predicated region
  $region18: #{unet_forward.7} parent=0 // pred_check
    _
  $region19: #{unet_forward.7} parent=0 // pred_check_branch
    %275 = sbr.rel (0) target = $region21
  $region20: #{unet_forward.7} parent=0 // pred_region
    _
  $region21: #{unet_forward.7} parent=0 // pred_fallthru
    _

// kernel: unet_forward.8
$region0: #{unet_forward.8}
  #allocation0 [shape = 'u32[]', space=smem, size = 0x4, offset = 0x4, fixed_abs, tag = 'smem constant byte address 0x4 - core index']
  #allocation1 [shape = 'u32[144,128]{1,0:T(1,128)}', space=vmem, size = 0x12000, scoped, tag = 'internal scratch']
  %s0 = inlined_call_operand.vmem [shape: bf16[128,144], index: 0, kind: input, shape index: {}]
  %s1 = inlined_call_operand.vmem [shape: bf16[144,128], index: 1, kind: input, shape index: {}]
  %s2 = inlined_call_operand.vmem [shape: f32[1,128], index: 2, kind: input, shape index: {}]
  %s3 = inlined_call_operand.vmem [shape: f32[128,128], index: 3, kind: output, shape index: {}]
  %s4 = sld [smem:[#allocation0]]
  $region22: #{unet_forward.8} parent=0
    _
  %s6 = ssub.s32 1, %s4
  %s7 = scalar_select 0, %s6, %s4
  // Predicated region
  $region2: #{unet_forward.8} parent=0 // pred_check
    _
  $region3: #{unet_forward.8} parent=0 // pred_check_branch
    %9 = sbr.rel (0) target = $region5
  $region4: #{unet_forward.8} parent=0 // pred_region
    _
  $region5: #{unet_forward.8} parent=0 // pred_fallthru
    _
  // Predicated region
  $region6: #{unet_forward.8} parent=0 // pred_check
    _
  $region7: #{unet_forward.8} parent=0 // pred_check_branch
    %11 = sbr.rel (0) target = $region9
  $region8: #{unet_forward.8} parent=0 // pred_region
    _
  $region9: #{unet_forward.8} parent=0 // pred_fallthru
    _
  // Predicated region
  $region10: #{unet_forward.8} parent=0 // pred_check
    _
  $region11: #{unet_forward.8} parent=0 // pred_check_branch
    %13 = sbr.rel (0) target = $region13
  $region12: #{unet_forward.8} parent=0 // pred_region
    _
  $region13: #{unet_forward.8} parent=0 // pred_fallthru
    _
  %v15 = vld [vmem:[%s0] sm:$0xff]
  %v16 = vld [vmem:[%s0 + $0x8] sm:$0xff]
  %v17 = vld [vmem:[%s0 + $0x10] sm:$0xff]
  %v18 = vld [vmem:[%s0 + $0x18] sm:$0xff]
  %v19 = vld [vmem:[%s0 + $0x20] sm:$0xff]
  %v20 = vld [vmem:[%s0 + $0x28] sm:$0xff]
  %v21 = vld [vmem:[%s0 + $0x30] sm:$0xff]
  %v22 = vld [vmem:[%s0 + $0x38] sm:$0xff]
  %v23 = vld [vmem:[%s0 + $0x40] sm:$0xff]
  %v24 = vld [vmem:[%s0 + $0x48] sm:$0xff]
  %v25 = vld [vmem:[%s0 + $0x50] sm:$0xff]
  %v26 = vld [vmem:[%s0 + $0x58] sm:$0xff]
  %v27 = vld [vmem:[%s0 + $0x60] sm:$0xff]
  %v28 = vld [vmem:[%s0 + $0x68] sm:$0xff]
  %v29 = vld [vmem:[%s0 + $0x70] sm:$0xff]
  %v30 = vld [vmem:[%s0 + $0x78] sm:$0xff]
  %v31 = vld [vmem:[%s1] sm:$0xf]
  %v32 = vld [vmem:[%s1 + $0x4] sm:$0xf]
  %v33 = vld [vmem:[%s1 + $0x8] sm:$0xf]
  %v34 = vld [vmem:[%s1 + $0xc] sm:$0xf]
  %v35 = vld [vmem:[%s1 + $0x10] sm:$0xf]
  %v36 = vld [vmem:[%s1 + $0x14] sm:$0xf]
  %v37 = vld [vmem:[%s1 + $0x18] sm:$0xf]
  %v38 = vld [vmem:[%s1 + $0x1c] sm:$0xf]
  %v39 = vld [vmem:[%s1 + $0x20] sm:$0xf]
  %v40 = vld [vmem:[%s1 + $0x24] sm:$0xf]
  %v41 = vld [vmem:[%s1 + $0x28] sm:$0xf]
  %v42 = vld [vmem:[%s1 + $0x2c] sm:$0xf]
  %v43 = vld [vmem:[%s1 + $0x30] sm:$0xf]
  %v44 = vld [vmem:[%s1 + $0x34] sm:$0xf]
  %v45 = vld [vmem:[%s1 + $0x38] sm:$0xf]
  %v46 = vld [vmem:[%s1 + $0x3c] sm:$0xf]
  %v47 = vld [vmem:[%s1 + $0x40] sm:$0xf]
  %v48 = vld [vmem:[%s1 + $0x44] sm:$0xf]
  %v49 = vld [vmem:[%s2] sm:$0x1]
  %v51 = vlaneseq
  %v52 = vshrl.u32 %v51, 7
  %v53 = vsub.s32 0, %v52
  %v54 = vrot.slane %v49, %v53
  %v72 = vunpack.c.l.b16 %v15
  %v73 = vunpack.c.h.b16 %v15
  %v74 = vunpack.c.l.b16 %v16
  %v75 = vunpack.c.h.b16 %v16
  %v76 = vunpack.c.l.b16 %v17
  %v77 = vunpack.c.h.b16 %v17
  %v78 = vunpack.c.l.b16 %v18
  %v79 = vunpack.c.h.b16 %v18
  %v80 = vunpack.c.l.b16 %v19
  %v81 = vunpack.c.h.b16 %v19
  %v82 = vunpack.c.l.b16 %v20
  %v83 = vunpack.c.h.b16 %v20
  %v84 = vunpack.c.l.b16 %v21
  %v85 = vunpack.c.h.b16 %v21
  %v86 = vunpack.c.l.b16 %v22
  %v87 = vunpack.c.h.b16 %v22
  %v88 = vunpack.c.l.b16 %v23
  %v89 = vunpack.c.h.b16 %v23
  %v90 = vunpack.c.l.b16 %v24
  %v91 = vunpack.c.h.b16 %v24
  %v92 = vunpack.c.l.b16 %v25
  %v93 = vunpack.c.h.b16 %v25
  %v94 = vunpack.c.l.b16 %v26
  %v95 = vunpack.c.h.b16 %v26
  %v96 = vunpack.c.l.b16 %v27
  %v97 = vunpack.c.h.b16 %v27
  %v98 = vunpack.c.l.b16 %v28
  %v99 = vunpack.c.h.b16 %v28
  %v100 = vunpack.c.l.b16 %v29
  %v101 = vunpack.c.h.b16 %v29
  %v102 = vunpack.c.l.b16 %v30
  %v103 = vunpack.c.h.b16 %v30
  %v104 = vpack.c.b16 %v74, %v72
  %v105 = vpack.c.b16 %v75, %v73
  %v106 = vpack.c.b16 %v78, %v76
  %v107 = vpack.c.b16 %v79, %v77
  %v108 = vpack.c.b16 %v82, %v80
  %v109 = vpack.c.b16 %v83, %v81
  %v110 = vpack.c.b16 %v86, %v84
  %v111 = vpack.c.b16 %v87, %v85
  %v112 = vpack.c.b16 %v90, %v88
  %v113 = vpack.c.b16 %v91, %v89
  %v114 = vpack.c.b16 %v94, %v92
  %v115 = vpack.c.b16 %v95, %v93
  %v116 = vpack.c.b16 %v98, %v96
  %v117 = vpack.c.b16 %v99, %v97
  %v118 = vpack.c.b16 %v102, %v100
  %v119 = vpack.c.b16 %v103, %v101
  %v146 = vunpack.c.l.b16 %v31
  %v147 = vunpack.c.l.b16 %v32
  %v148 = vunpack.c.l.b16 %v33
  %v149 = vunpack.c.l.b16 %v34
  %v150 = vunpack.c.l.b16 %v35
  %v151 = vunpack.c.l.b16 %v36
  %v152 = vunpack.c.l.b16 %v37
  %v153 = vunpack.c.l.b16 %v38
  %v154 = vunpack.c.l.b16 %v39
  %v155 = vunpack.c.l.b16 %v40
  %v156 = vunpack.c.l.b16 %v41
  %v157 = vunpack.c.l.b16 %v42
  %v158 = vunpack.c.l.b16 %v43
  %v159 = vunpack.c.l.b16 %v44
  %v160 = vunpack.c.l.b16 %v45
  %v161 = vunpack.c.l.b16 %v46
  %v162 = vunpack.c.l.b16 %v47
  %v163 = vunpack.c.l.b16 %v48
  %v164 = vpack.c.b16 %v147, %v146
  %v165 = vpack.c.b16 %v149, %v148
  %v166 = vpack.c.b16 %v151, %v150
  %v167 = vpack.c.b16 %v153, %v152
  %v168 = vpack.c.b16 %v155, %v154
  %v169 = vpack.c.b16 %v157, %v156
  %v170 = vpack.c.b16 %v159, %v158
  %v171 = vpack.c.b16 %v161, %v160
  %v172 = vpack.c.b16 %v163, %v162
  %vm182 = vcmask 130048
  %v184 = vsel %vm182, %v105, 0
  %v187 = vsel %vm182, %v107, 0
  %v190 = vsel %vm182, %v109, 0
  %v193 = vsel %vm182, %v111, 0
  %v196 = vsel %vm182, %v113, 0
  %v199 = vsel %vm182, %v115, 0
  %v202 = vsel %vm182, %v117, 0
  %v205 = vsel %vm182, %v119, 0
  %207 = vmatprep.subr.bf16.mxu0 0
  %208 = vmatpush1.bf16.msra.mxu0 %v164
  %209 = vmatprep.subr.bf16.mxu0 0
  %210 = vmatpush1.bf16.msra.mxu0 %v165
  %211 = vmatprep.subr.bf16.mxu0 0
  %212 = vmatpush1.bf16.msra.mxu0 %v166
  %213 = vmatprep.subr.bf16.mxu0 0
  %214 = vmatpush1.bf16.msra.mxu0 %v167
  %215 = vmatprep.subr.bf16.mxu0 0
  %216 = vmatpush1.bf16.msra.mxu0 %v168
  %217 = vmatprep.subr.bf16.mxu0 0
  %218 = vmatpush1.bf16.msra.mxu0 %v169
  %219 = vmatprep.subr.bf16.mxu0 0
  %220 = vmatpush1.bf16.msra.mxu0 %v170
  %221 = vmatprep.subr.bf16.mxu0 0
  %222 = vmatpush1.bf16.msra.mxu0 %v171
  %223 = vmatprep.subr.bf16.mxu0 0
  %224 = vmatpush1.bf16.msra.mxu0 %v172
  %225 = vmatprep.subr.bf16.mxu0 0
  %226 = vmatpush1.bf16.msra.mxu0 0
  %227 = vmatprep.subr.bf16.mxu0 0
  %228 = vmatpush1.bf16.msra.mxu0 0
  %229 = vmatprep.subr.bf16.mxu0 0
  %230 = vmatpush1.bf16.msra.mxu0 0
  %231 = vmatprep.subr.bf16.mxu0 0
  %232 = vmatpush1.bf16.msra.mxu0 0
  %233 = vmatprep.subr.bf16.mxu0 0
  %234 = vmatpush1.bf16.msra.mxu0 0
  %235 = vmatprep.subr.bf16.mxu0 0
  %236 = vmatpush1.bf16.msra.mxu0 0
  %237 = vmatprep.subr.bf16.mxu0 0
  %238 = vmatpush1.bf16.msra.mxu0 0
  %239 = vmatprep.mubr.bf16.mxu0 %v184
  %240 = vmatmul.mubr.bf16.gmra.mrb[0].mxu0 %v104
  %v241 = vpop.f32.mrb[0].mxu0
  %v242 = vadd.f32 %v54, %v241
  %v243 = vpop.f32.mrb[0].mxu0
  %v244 = vpop.f32.mrb[0].mxu0
  %v245 = vadd.f32 %v54, %v244
  %v246 = vpop.f32.mrb[0].mxu0
  %247 = vmatprep.mubr.bf16.mxu0 %v187
  %248 = vmatmul.mubr.bf16.gmra.mrb[0].mxu0 %v106
  %v249 = vpop.f32.mrb[0].mxu0
  %v250 = vadd.f32 %v54, %v249
  %v251 = vpop.f32.mrb[0].mxu0
  %v252 = vpop.f32.mrb[0].mxu0
  %v253 = vadd.f32 %v54, %v252
  %v254 = vpop.f32.mrb[0].mxu0
  %255 = vmatprep.mubr.bf16.mxu0 %v190
  %256 = vmatmul.mubr.bf16.gmra.mrb[0].mxu0 %v108
  %v257 = vpop.f32.mrb[0].mxu0
  %v258 = vadd.f32 %v54, %v257
  %v259 = vpop.f32.mrb[0].mxu0
  %v260 = vpop.f32.mrb[0].mxu0
  %v261 = vadd.f32 %v54, %v260
  %v262 = vpop.f32.mrb[0].mxu0
  %263 = vmatprep.mubr.bf16.mxu0 %v193
  %264 = vmatmul.mubr.bf16.gmra.mrb[0].mxu0 %v110
  %v265 = vpop.f32.mrb[0].mxu0
  %v266 = vadd.f32 %v54, %v265
  %v267 = vpop.f32.mrb[0].mxu0
  %v268 = vpop.f32.mrb[0].mxu0
  %v269 = vadd.f32 %v54, %v268
  %v270 = vpop.f32.mrb[0].mxu0
  %271 = vmatprep.mubr.bf16.mxu0 %v196
  %272 = vmatmul.mubr.bf16.gmra.mrb[0].mxu0 %v112
  %v273 = vpop.f32.mrb[0].mxu0
  %v274 = vadd.f32 %v54, %v273
  %v275 = vpop.f32.mrb[0].mxu0
  %v276 = vpop.f32.mrb[0].mxu0
  %v277 = vadd.f32 %v54, %v276
  %v278 = vpop.f32.mrb[0].mxu0
  %279 = vmatprep.mubr.bf16.mxu0 %v199
  %280 = vmatmul.mubr.bf16.gmra.mrb[0].mxu0 %v114
  %v281 = vpop.f32.mrb[0].mxu0
  %v282 = vadd.f32 %v54, %v281
  %v283 = vpop.f32.mrb[0].mxu0
  %v284 = vpop.f32.mrb[0].mxu0
  %v285 = vadd.f32 %v54, %v284
  %v286 = vpop.f32.mrb[0].mxu0
  %287 = vmatprep.mubr.bf16.mxu0 %v202
  %288 = vmatmul.mubr.bf16.gmra.mrb[0].mxu0 %v116
  %v289 = vpop.f32.mrb[0].mxu0
  %v290 = vadd.f32 %v54, %v289
  %v291 = vpop.f32.mrb[0].mxu0
  %v292 = vpop.f32.mrb[0].mxu0
  %v293 = vadd.f32 %v54, %v292
  %v294 = vpop.f32.mrb[0].mxu0
  %295 = vmatprep.mubr.bf16.mxu0 %v205
  %296 = vmatmul.mubr.bf16.gmra.mrb[0].mxu0 %v118
  %v297 = vpop.f32.mrb[0].mxu0
  %v298 = vadd.f32 %v54, %v297
  %v299 = vpop.f32.mrb[0].mxu0
  %v300 = vpop.f32.mrb[0].mxu0
  %v301 = vadd.f32 %v54, %v300
  %v302 = vpop.f32.mrb[0].mxu0
  %303 = vdwg.mxu0
  %v304 = vmax.f32 %v242, 0.0
  %v305 = vmax.f32 %v245, 0.0
  %v306 = vmax.f32 %v250, 0.0
  %v307 = vmax.f32 %v253, 0.0
  %v308 = vmax.f32 %v258, 0.0
  %v309 = vmax.f32 %v261, 0.0
  %v310 = vmax.f32 %v266, 0.0
  %v311 = vmax.f32 %v269, 0.0
  %v312 = vmax.f32 %v274, 0.0
  %v313 = vmax.f32 %v277, 0.0
  %v314 = vmax.f32 %v282, 0.0
  %v315 = vmax.f32 %v285, 0.0
  %v316 = vmax.f32 %v290, 0.0
  %v317 = vmax.f32 %v293, 0.0
  %v318 = vmax.f32 %v298, 0.0
  %v319 = vmax.f32 %v301, 0.0
  %320 = vst [vmem:[%s3] sm:$0xff] %v304
  %321 = vst [vmem:[%s3 + $0x8] sm:$0xff] %v305
  %322 = vst [vmem:[%s3 + $0x10] sm:$0xff] %v306
  %323 = vst [vmem:[%s3 + $0x18] sm:$0xff] %v307
  %324 = vst [vmem:[%s3 + $0x20] sm:$0xff] %v308
  %325 = vst [vmem:[%s3 + $0x28] sm:$0xff] %v309
  %326 = vst [vmem:[%s3 + $0x30] sm:$0xff] %v310
  %327 = vst [vmem:[%s3 + $0x38] sm:$0xff] %v311
  %328 = vst [vmem:[%s3 + $0x40] sm:$0xff] %v312
  %329 = vst [vmem:[%s3 + $0x48] sm:$0xff] %v313
  %330 = vst [vmem:[%s3 + $0x50] sm:$0xff] %v314
  %331 = vst [vmem:[%s3 + $0x58] sm:$0xff] %v315
  %332 = vst [vmem:[%s3 + $0x60] sm:$0xff] %v316
  %333 = vst [vmem:[%s3 + $0x68] sm:$0xff] %v317
  %334 = vst [vmem:[%s3 + $0x70] sm:$0xff] %v318
  %335 = vst [vmem:[%s3 + $0x78] sm:$0xff] %v319
  // Predicated region
  $region14: #{unet_forward.8} parent=0 // pred_check
    _
  $region15: #{unet_forward.8} parent=0 // pred_check_branch
    %337 = sbr.rel (0) target = $region17
  $region16: #{unet_forward.8} parent=0 // pred_region
    _
  $region17: #{unet_forward.8} parent=0 // pred_fallthru
    _
  // Predicated region
  $region18: #{unet_forward.8} parent=0 // pred_check
    _
  $region19: #{unet_forward.8} parent=0 // pred_check_branch
    %339 = sbr.rel (0) target = $region21
  $region20: #{unet_forward.8} parent=0 // pred_region
    _
  $region21: #{unet_forward.8} parent=0 // pred_fallthru
    _

// kernel: unet_forward.9
$region0: #{unet_forward.9}
  #allocation0 [shape = 'u32[]', space=smem, size = 0x4, offset = 0x4, fixed_abs, tag = 'smem constant byte address 0x4 - core index']
  #allocation1 [shape = 'u32[144,128]{1,0:T(1,128)}', space=vmem, size = 0x12000, scoped, tag = 'internal scratch']
  %s0 = inlined_call_operand.vmem [shape: bf16[16,8], index: 0, kind: input, shape index: {}]
  %s1 = inlined_call_operand.vmem [shape: bf16[8,128], index: 1, kind: input, shape index: {}]
  %s2 = inlined_call_operand.vmem [shape: f32[1,128], index: 2, kind: input, shape index: {}]
  %s3 = inlined_call_operand.vmem [shape: f32[16,128], index: 3, kind: output, shape index: {}]
  %s4 = sld [smem:[#allocation0]]
  $region22: #{unet_forward.9} parent=0
    _
  %s6 = ssub.s32 1, %s4
  %s7 = scalar_select 0, %s6, %s4
  // Predicated region
  $region2: #{unet_forward.9} parent=0 // pred_check
    _
  $region3: #{unet_forward.9} parent=0 // pred_check_branch
    %9 = sbr.rel (0) target = $region5
  $region4: #{unet_forward.9} parent=0 // pred_region
    _
  $region5: #{unet_forward.9} parent=0 // pred_fallthru
    _
  // Predicated region
  $region6: #{unet_forward.9} parent=0 // pred_check
    _
  $region7: #{unet_forward.9} parent=0 // pred_check_branch
    %11 = sbr.rel (0) target = $region9
  $region8: #{unet_forward.9} parent=0 // pred_region
    _
  $region9: #{unet_forward.9} parent=0 // pred_fallthru
    _
  // Predicated region
  $region10: #{unet_forward.9} parent=0 // pred_check
    _
  $region11: #{unet_forward.9} parent=0 // pred_check_branch
    %13 = sbr.rel (0) target = $region13
  $region12: #{unet_forward.9} parent=0 // pred_region
    _
  $region13: #{unet_forward.9} parent=0 // pred_fallthru
    _
  %v15 = vld [vmem:[%s0] sm:$0xf]
  %v16 = vld [vmem:[%s0 + $0x4] sm:$0xf]
  %v17 = vld [vmem:[%s1] sm:$0xf]
  %v18 = vld [vmem:[%s2] sm:$0x1]
  %v20 = vlaneseq
  %v21 = vshrl.u32 %v20, 7
  %v22 = vsub.s32 0, %v21
  %v23 = vrot.slane %v18, %v22
  %v27 = vunpack.c.l.b16 %v15
  %v28 = vunpack.c.l.b16 %v16
  %v29 = vpack.c.b16 %v28, %v27
  %vm30 = vcmask 64512
  %v32 = vsel %vm30, %v29, 0
  %vm34 = vcmask 1043456
  %v36 = vsel %vm34, %v17, 0
  %38 = vmatprep.subr.bf16.mxu0 0
  %39 = vmatpush1.bf16.msra.mxu0 %v36
  %40 = vmatprep.subr.bf16.mxu0 0
  %41 = vmatpush1.bf16.msra.mxu0 0
  %42 = vmatprep.subr.bf16.mxu0 0
  %43 = vmatpush1.bf16.msra.mxu0 0
  %44 = vmatprep.subr.bf16.mxu0 0
  %45 = vmatpush1.bf16.msra.mxu0 0
  %46 = vmatprep.subr.bf16.mxu0 0
  %47 = vmatpush1.bf16.msra.mxu0 0
  %48 = vmatprep.subr.bf16.mxu0 0
  %49 = vmatpush1.bf16.msra.mxu0 0
  %50 = vmatprep.subr.bf16.mxu0 0
  %51 = vmatpush1.bf16.msra.mxu0 0
  %52 = vmatprep.subr.bf16.mxu0 0
  %53 = vmatpush1.bf16.msra.mxu0 0
  %54 = vmatprep.subr.bf16.mxu0 0
  %55 = vmatpush1.bf16.msra.mxu0 0
  %56 = vmatprep.subr.bf16.mxu0 0
  %57 = vmatpush1.bf16.msra.mxu0 0
  %58 = vmatprep.subr.bf16.mxu0 0
  %59 = vmatpush1.bf16.msra.mxu0 0
  %60 = vmatprep.subr.bf16.mxu0 0
  %61 = vmatpush1.bf16.msra.mxu0 0
  %62 = vmatprep.subr.bf16.mxu0 0
  %63 = vmatpush1.bf16.msra.mxu0 0
  %64 = vmatprep.subr.bf16.mxu0 0
  %65 = vmatpush1.bf16.msra.mxu0 0
  %66 = vmatprep.subr.bf16.mxu0 0
  %67 = vmatpush1.bf16.msra.mxu0 0
  %68 = vmatprep.subr.bf16.mxu0 0
  %69 = vmatpush1.bf16.msra.mxu0 0
  %70 = vmatprep.mubr.bf16.mxu0 0
  %71 = vmatmul.mubr.bf16.gmra.mrb[0].mxu0 %v32
  %v72 = vpop.f32.mrb[0].mxu0
  %v73 = vadd.f32 %v23, %v72
  %v74 = vpop.f32.mrb[0].mxu0
  %v75 = vpop.f32.mrb[0].mxu0
  %v76 = vadd.f32 %v23, %v75
  %v77 = vpop.f32.mrb[0].mxu0
  %78 = vdwg.mxu0
  %79 = vst [vmem:[%s3] sm:$0xff] %v73
  %80 = vst [vmem:[%s3 + $0x8] sm:$0xff] %v76
  // Predicated region
  $region14: #{unet_forward.9} parent=0 // pred_check
    _
  $region15: #{unet_forward.9} parent=0 // pred_check_branch
    %82 = sbr.rel (0) target = $region17
  $region16: #{unet_forward.9} parent=0 // pred_region
    _
  $region17: #{unet_forward.9} parent=0 // pred_fallthru
    _
  // Predicated region
  $region18: #{unet_forward.9} parent=0 // pred_check
    _
  $region19: #{unet_forward.9} parent=0 // pred_check_branch
    %84 = sbr.rel (0) target = $region21
  $region20: #{unet_forward.9} parent=0 // pred_region
    _
  $region21: #{unet_forward.9} parent=0 // pred_fallthru
    _

// kernel: unet_forward.10
$region0: #{unet_forward.10}
  #allocation0 [shape = 'u32[]', space=smem, size = 0x4, offset = 0x4, fixed_abs, tag = 'smem constant byte address 0x4 - core index']
  #allocation1 [shape = 'u32[144,128]{1,0:T(1,128)}', space=vmem, size = 0x12000, scoped, tag = 'internal scratch']
  %s0 = inlined_call_operand.vmem [shape: bf16[16,8], index: 0, kind: input, shape index: {}]
  %s1 = inlined_call_operand.vmem [shape: bf16[8,256], index: 1, kind: input, shape index: {}]
  %s2 = inlined_call_operand.vmem [shape: f32[1,256], index: 2, kind: input, shape index: {}]
  %s3 = inlined_call_operand.vmem [shape: f32[16,256], index: 3, kind: output, shape index: {}]
  %s4 = sld [smem:[#allocation0]]
  $region22: #{unet_forward.10} parent=0
    _
  %s6 = ssub.s32 1, %s4
  %s7 = scalar_select 0, %s6, %s4
  // Predicated region
  $region2: #{unet_forward.10} parent=0 // pred_check
    _
  $region3: #{unet_forward.10} parent=0 // pred_check_branch
    %9 = sbr.rel (0) target = $region5
  $region4: #{unet_forward.10} parent=0 // pred_region
    _
  $region5: #{unet_forward.10} parent=0 // pred_fallthru
    _
  // Predicated region
  $region6: #{unet_forward.10} parent=0 // pred_check
    _
  $region7: #{unet_forward.10} parent=0 // pred_check_branch
    %11 = sbr.rel (0) target = $region9
  $region8: #{unet_forward.10} parent=0 // pred_region
    _
  $region9: #{unet_forward.10} parent=0 // pred_fallthru
    _
  // Predicated region
  $region10: #{unet_forward.10} parent=0 // pred_check
    _
  $region11: #{unet_forward.10} parent=0 // pred_check_branch
    %13 = sbr.rel (0) target = $region13
  $region12: #{unet_forward.10} parent=0 // pred_region
    _
  $region13: #{unet_forward.10} parent=0 // pred_fallthru
    _
  %v15 = vld [vmem:[%s0] sm:$0xf]
  %v16 = vld [vmem:[%s0 + $0x4] sm:$0xf]
  %v17 = vld [vmem:[%s1] sm:$0xff]
  %v18 = vld [vmem:[%s2] sm:$0x3]
  %v20 = vlaneseq
  %v21 = vshrl.u32 %v20, 7
  %v22 = vsub.s32 0, %v21
  %v23 = vrot.slane %v18, %v22
  %v24 = vlaneseq
  %v25 = vshrl.u32 %v24, 7
  %v26 = vsub.s32 1, %v25
  %v27 = vrot.slane %v18, %v26
  %v32 = vunpack.c.l.b16 %v15
  %v33 = vunpack.c.l.b16 %v16
  %v34 = vpack.c.b16 %v33, %v32
  %v36 = vunpack.c.l.b16 %v17
  %v37 = vunpack.c.h.b16 %v17
  %v38 = vpack.c.b16 %v36, %v36
  %v39 = vpack.c.b16 %v37, %v37
  %vm40 = vcmask 64512
  %v42 = vsel %vm40, %v34, 0
  %vm44 = vcmask 1043456
  %v46 = vsel %vm44, %v38, 0
  %v49 = vsel %vm44, %v39, 0
  %51 = vmatprep.subr.bf16.mxu0 %v49
  %52 = vmatpush1.bf16.msra.mxu0 %v46
  %53 = vmatprep.subr.bf16.mxu0 0
  %54 = vmatpush1.bf16.msra.mxu0 0
  %55 = vmatprep.subr.bf16.mxu0 0
  %56 = vmatpush1.bf16.msra.mxu0 0
  %57 = vmatprep.subr.bf16.mxu0 0
  %58 = vmatpush1.bf16.msra.mxu0 0
  %59 = vmatprep.subr.bf16.mxu0 0
  %60 = vmatpush1.bf16.msra.mxu0 0
  %61 = vmatprep.subr.bf16.mxu0 0
  %62 = vmatpush1.bf16.msra.mxu0 0
  %63 = vmatprep.subr.bf16.mxu0 0
  %64 = vmatpush1.bf16.msra.mxu0 0
  %65 = vmatprep.subr.bf16.mxu0 0
  %66 = vmatpush1.bf16.msra.mxu0 0
  %67 = vmatprep.subr.bf16.mxu0 0
  %68 = vmatpush1.bf16.msra.mxu0 0
  %69 = vmatprep.subr.bf16.mxu0 0
  %70 = vmatpush1.bf16.msra.mxu0 0
  %71 = vmatprep.subr.bf16.mxu0 0
  %72 = vmatpush1.bf16.msra.mxu0 0
  %73 = vmatprep.subr.bf16.mxu0 0
  %74 = vmatpush1.bf16.msra.mxu0 0
  %75 = vmatprep.subr.bf16.mxu0 0
  %76 = vmatpush1.bf16.msra.mxu0 0
  %77 = vmatprep.subr.bf16.mxu0 0
  %78 = vmatpush1.bf16.msra.mxu0 0
  %79 = vmatprep.subr.bf16.mxu0 0
  %80 = vmatpush1.bf16.msra.mxu0 0
  %81 = vmatprep.subr.bf16.mxu0 0
  %82 = vmatpush1.bf16.msra.mxu0 0
  %83 = vmatprep.mubr.bf16.mxu0 0
  %84 = vmatmul.mubr.bf16.gmra.mrb[0].mxu0 %v42
  %v85 = vpop.f32.mrb[0].mxu0
  %v86 = vadd.f32 %v23, %v85
  %v87 = vpop.f32.mrb[0].mxu0
  %v88 = vadd.f32 %v27, %v87
  %v89 = vpop.f32.mrb[0].mxu0
  %v90 = vadd.f32 %v23, %v89
  %v91 = vpop.f32.mrb[0].mxu0
  %v92 = vadd.f32 %v27, %v91
  %93 = vdwg.mxu0
  %94 = vst [vmem:[%s3] sm:$0xff] %v86
  %95 = vst [vmem:[%s3 + $0x8] sm:$0xff] %v88
  %96 = vst [vmem:[%s3 + $0x10] sm:$0xff] %v90
  %97 = vst [vmem:[%s3 + $0x18] sm:$0xff] %v92
  // Predicated region
  $region14: #{unet_forward.10} parent=0 // pred_check
    _
  $region15: #{unet_forward.10} parent=0 // pred_check_branch
    %99 = sbr.rel (0) target = $region17
  $region16: #{unet_forward.10} parent=0 // pred_region
    _
  $region17: #{unet_forward.10} parent=0 // pred_fallthru
    _
  // Predicated region
  $region18: #{unet_forward.10} parent=0 // pred_check
    _
  $region19: #{unet_forward.10} parent=0 // pred_check_branch
    %101 = sbr.rel (0) target = $region21
  $region20: #{unet_forward.10} parent=0 // pred_region
    _
  $region21: #{unet_forward.10} parent=0 // pred_fallthru
    _

// kernel: unet_forward.11
$region0: #{unet_forward.11}
  #allocation0 [shape = 'u32[]', space=smem, size = 0x4, offset = 0x4, fixed_abs, tag = 'smem constant byte address 0x4 - core index']
  #allocation1 [shape = 'u32[144,128]{1,0:T(1,128)}', space=vmem, size = 0x12000, scoped, tag = 'internal scratch']
  %s0 = inlined_call_operand.vmem [shape: bf16[512,144], index: 0, kind: input, shape index: {}]
  %s1 = inlined_call_operand.vmem [shape: bf16[144,128], index: 1, kind: input, shape index: {}]
  %s2 = inlined_call_operand.vmem [shape: f32[1,128], index: 2, kind: input, shape index: {}]
  %s3 = inlined_call_operand.vmem [shape: f32[512,128], index: 3, kind: output, shape index: {}]
  %s4 = sld [smem:[#allocation0]]
  $region45: #{unet_forward.11} parent=0
    _
  %s6 = ssub.s32 1, %s4
  %s7 = scalar_select 0, %s6, %s4
  loop: start=0, step=1, limit=6
  $region2: #{unet_forward.11} parent=0 // loop_pre_header
    _
  $region3: #{unet_forward.11} parent=0 // loop_header
    %s9 = sphi 0, %s13
    %p10 = scmp.ge.s32.totalorder %s9, 6
    %s19 = sphi 0, %s21
    %s22 = sphi 0, %s19
    %s23 = sphi 0, %s22
    %s39 = sphi 0, %s23
    %s43 = sphi 0, %s43
    %s45 = sphi 0, %s43
    %s46 = sphi 0, %s45
    %s60 = sphi 0, %s46
    %s64 = sphi 0, %s64
    %s66 = sphi 0, %s64
    %s67 = sphi 0, %s66
    %s81 = sphi 0, %s67
    %s87 = sphi 0, %s89
    %s90 = sphi 0, %s87
    %s91 = sphi 0, %s90
    %s107 = sphi 0, %s91
  $region4: #{unet_forward.11} parent=0 // loop_header_branch
    %12 = sbr.rel (%p10) target = $region8
  $region5: #{unet_forward.11} parent=0 // loop_body
    %s14 = ssub.s32 %s9, 1
    %s15 = ssub.s32 %s9, 2
    %s16 = sadd.s32 %s9, 1
    %s17 = ssub.s32 %s9, %s16
    %p18 = scmp.eq.s32.totalorder %s17, 0
    %s20 = sadd.s32 %s19, 1
    %s21 = scalar_select %p18, %s19, %s20
    %p24 = pneg %p18
    %p25 = scmp.eq.s32.totalorder %s9, 3
    %p26 = por %p24, %p25
    %p27 = scmp.ne.s32.totalorder %s19, %s22
    %p28 = scmp.eq.s32.totalorder %s9, 0
    %p29 = por %p27, %p28
    %p30 = scmp.ne.s32.totalorder %s19, %s22
    %p31 = scmp.eq.s32.totalorder %s14, 3
    %p32 = por %p30, %p31
    %p33 = scmp.ne.s32.totalorder %s22, %s23
    %p34 = scmp.eq.s32.totalorder %s14, 0
    %p35 = por %p33, %p34
    %p36 = scmp.ne.s32.totalorder %s22, %s23
    %p37 = scmp.eq.s32.totalorder %s15, 3
    %p38 = por %p36, %p37
    %p40 = scmp.ne.s32.totalorder %s23, %s39
    %p41 = scmp.eq.s32.totalorder %s15, 0
    %p42 = por %p40, %p41
    %s44 = sadd.s32 %s43, 1
    %p47 = scmp.eq.s32.totalorder %s9, 3
    %p48 = scmp.ne.s32.totalorder %s43, %s45
    %p49 = scmp.eq.s32.totalorder %s9, 0
    %p50 = por %p48, %p49
    %p51 = scmp.ne.s32.totalorder %s43, %s45
    %p52 = scmp.eq.s32.totalorder %s14, 3
    %p53 = por %p51, %p52
    %p54 = scmp.ne.s32.totalorder %s45, %s46
    %p55 = scmp.eq.s32.totalorder %s14, 0
    %p56 = por %p54, %p55
    %p57 = scmp.ne.s32.totalorder %s45, %s46
    %p58 = scmp.eq.s32.totalorder %s15, 3
    %p59 = por %p57, %p58
    %p61 = scmp.ne.s32.totalorder %s46, %s60
    %p62 = scmp.eq.s32.totalorder %s15, 0
    %p63 = por %p61, %p62
    %s65 = sadd.s32 %s64, 1
    %p68 = scmp.eq.s32.totalorder %s9, 3
    %p69 = scmp.ne.s32.totalorder %s64, %s66
    %p70 = scmp.eq.s32.totalorder %s9, 0
    %p71 = por %p69, %p70
    %p72 = scmp.ne.s32.totalorder %s64, %s66
    %p73 = scmp.eq.s32.totalorder %s14, 3
    %p74 = por %p72, %p73
    %p75 = scmp.ne.s32.totalorder %s66, %s67
    %p76 = scmp.eq.s32.totalorder %s14, 0
    %p77 = por %p75, %p76
    %p78 = scmp.ne.s32.totalorder %s66, %s67
    %p79 = scmp.eq.s32.totalorder %s15, 3
    %p80 = por %p78, %p79
    %p82 = scmp.ne.s32.totalorder %s67, %s81
    %p83 = scmp.eq.s32.totalorder %s15, 0
    %p84 = por %p82, %p83
    %s85 = ssub.s32 %s9, %s16
    %p86 = scmp.eq.s32.totalorder %s85, 0
    %s88 = sadd.s32 %s87, 1
    %s89 = scalar_select %p86, %s87, %s88
    %p92 = pneg %p86
    %p93 = scmp.eq.s32.totalorder %s9, 3
    %p94 = por %p92, %p93
    %p95 = scmp.ne.s32.totalorder %s87, %s90
    %p96 = scmp.eq.s32.totalorder %s9, 0
    %p97 = por %p95, %p96
    %p98 = scmp.ne.s32.totalorder %s87, %s90
    %p99 = scmp.eq.s32.totalorder %s14, 3
    %p100 = por %p98, %p99
    %p101 = scmp.ne.s32.totalorder %s90, %s91
    %p102 = scmp.eq.s32.totalorder %s14, 0
    %p103 = por %p101, %p102
    %p104 = scmp.ne.s32.totalorder %s90, %s91
    %p105 = scmp.eq.s32.totalorder %s15, 3
    %p106 = por %p104, %p105
    %p108 = scmp.ne.s32.totalorder %s91, %s107
    %p109 = scmp.eq.s32.totalorder %s15, 0
    %p110 = por %p108, %p109
    %p111 = scmp.le.s32.totalorder 1, %s9
    %p112 = scmp.lt.s32.totalorder %s9, 5
    %p113 = pnand %p111, %p112
    %p114 = pneg %p113
    // Predicated region
    $region9: #{unet_forward.11} parent=5 // pred_check
      _
    $region10: #{unet_forward.11} parent=5 // pred_check_branch
      %116 = sbr.rel (%p113) target = $region12
    $region11: #{unet_forward.11} parent=5 // pred_region
      %s117 = ssub.s32 %s9, 1
      // Predicated region
      $region13: #{unet_forward.11} parent=11 // pred_check
        %p118 = pneg %p56
      $region14: #{unet_forward.11} parent=11 // pred_check_branch
        %120 = sbr.rel (%p118) target = $region16
      $region15: #{unet_forward.11} parent=11 // pred_region
        _
      $region16: #{unet_forward.11} parent=11 // pred_fallthru
        _
      // Predicated region
      $region17: #{unet_forward.11} parent=11 // pred_check
        %p121 = pneg %p77
      $region18: #{unet_forward.11} parent=11 // pred_check_branch
        %123 = sbr.rel (%p121) target = $region20
      $region19: #{unet_forward.11} parent=11 // pred_region
        _
      $region20: #{unet_forward.11} parent=11 // pred_fallthru
        _
    $region12: #{unet_forward.11} parent=5 // pred_fallthru
      _
    %p124 = scmp.lt.s32.totalorder %s9, 4
    // Predicated region
    $region21: #{unet_forward.11} parent=5 // pred_check
      %p125 = pneg %p124
    $region22: #{unet_forward.11} parent=5 // pred_check_branch
      %127 = sbr.rel (%p125) target = $region24
    $region23: #{unet_forward.11} parent=5 // pred_region
      // Predicated region
      $region25: #{unet_forward.11} parent=23 // pred_check
        %p128 = pneg %p29
      $region26: #{unet_forward.11} parent=23 // pred_check_branch
        %130 = sbr.rel (%p128) target = $region28
      $region27: #{unet_forward.11} parent=23 // pred_region
        %s131 = smul.u32 16, %s9
        %p132 = scmp.lt.s32.totalorder %s131, 63
        %s133 = scalar_select %p132, %s131, 63
        %s134 = smul.addr %s133, 2
        %s135 = smul.addr %s134, 4
        %s136 = scalar_lea.vmem %s0, %s135
        %s137 = smul.u32 16, %s9
      $region28: #{unet_forward.11} parent=23 // pred_fallthru
        _
    $region24: #{unet_forward.11} parent=5 // pred_fallthru
      _
    %p138 = scmp.le.s32.totalorder 1, %s9
    %p139 = scmp.lt.s32.totalorder %s9, 5
    %p140 = pnand %p138, %p139
    %p141 = pneg %p140
    // Predicated region
    $region29: #{unet_forward.11} parent=5 // pred_check
      _
    $region30: #{unet_forward.11} parent=5 // pred_check_branch
      %143 = sbr.rel (%p140) target = $region32
    $region31: #{unet_forward.11} parent=5 // pred_region
      %s144 = ssub.s32 %s9, 1
      %s145 = smul.u32 16, %s14
      %p146 = scmp.lt.s32.totalorder %s145, 63
      %s147 = scalar_select %p146, %s145, 63
      %s148 = smul.addr %s147, 2
      %s149 = smul.addr %s148, 4
      %s150 = scalar_lea.vmem %s0, %s149
      %p151 = pneg %p35
      %p152 = pneg %p32
      %p153 = pneg %p56
      %p154 = pneg %p53
      %p155 = pneg %p77
      %p156 = pneg %p74
      %p157 = pneg %p103
      %p158 = pneg %p100
      %s159 = smul.u32 16, %s14
      %p160 = scmp.lt.s32.totalorder %s159, 63
      %s161 = scalar_select %p160, %s159, 63
      %s162 = smul.addr %s161, 8
      %s163 = scalar_lea.vmem %s3, %s162
      %s164 = smul.u32 16, %s14
      %p165 = scmp.lt.s32.totalorder %s164, 63
      %s166 = scalar_select %p165, %s164, 63
      %s167 = smul.addr %s166, 2
      %s168 = smul.addr %s167, 4
      %s169 = scalar_lea.vmem %s0, %s168
      %s170 = smul.u32 16, %s14
      %s171 = smul.u32 16, %s14
      %p172 = scmp.lt.s32.totalorder %s171, 63
      %s173 = scalar_select %p172, %s171, 63
      %s174 = smul.addr %s173, 8
      %s175 = scalar_lea.vmem %s3, %s174
      %s176 = smul.u32 16, %s14
      %v178 = vld [vmem:[%s169] sm:$0xff]
      %v179 = vld [vmem:[%s169 + $0x8] sm:$0xff]
      %v180 = vld [vmem:[%s169 + $0x10] sm:$0xff]
      %v181 = vld [vmem:[%s169 + $0x18] sm:$0xff]
      %v182 = vld [vmem:[%s169 + $0x20] sm:$0xff]
      %v183 = vld [vmem:[%s169 + $0x28] sm:$0xff]
      %v184 = vld [vmem:[%s169 + $0x30] sm:$0xff]
      %v185 = vld [vmem:[%s169 + $0x38] sm:$0xff]
      %v186 = vld [vmem:[%s169 + $0x40] sm:$0xff]
      %v187 = vld [vmem:[%s169 + $0x48] sm:$0xff]
      %v188 = vld [vmem:[%s169 + $0x50] sm:$0xff]
      %v189 = vld [vmem:[%s169 + $0x58] sm:$0xff]
      %v190 = vld [vmem:[%s169 + $0x60] sm:$0xff]
      %v191 = vld [vmem:[%s169 + $0x68] sm:$0xff]
      %v192 = vld [vmem:[%s169 + $0x70] sm:$0xff]
      %v193 = vld [vmem:[%s169 + $0x78] sm:$0xff]
      %v194 = vld [vmem:[%s1] sm:$0xf]
      %v195 = vld [vmem:[%s1 + $0x4] sm:$0xf]
      %v196 = vld [vmem:[%s1 + $0x8] sm:$0xf]
      %v197 = vld [vmem:[%s1 + $0xc] sm:$0xf]
      %v198 = vld [vmem:[%s1 + $0x10] sm:$0xf]
      %v199 = vld [vmem:[%s1 + $0x14] sm:$0xf]
      %v200 = vld [vmem:[%s1 + $0x18] sm:$0xf]
      %v201 = vld [vmem:[%s1 + $0x1c] sm:$0xf]
      %v202 = vld [vmem:[%s1 + $0x20] sm:$0xf]
      %v203 = vld [vmem:[%s1 + $0x24] sm:$0xf]
      %v204 = vld [vmem:[%s1 + $0x28] sm:$0xf]
      %v205 = vld [vmem:[%s1 + $0x2c] sm:$0xf]
      %v206 = vld [vmem:[%s1 + $0x30] sm:$0xf]
      %v207 = vld [vmem:[%s1 + $0x34] sm:$0xf]
      %v208 = vld [vmem:[%s1 + $0x38] sm:$0xf]
      %v209 = vld [vmem:[%s1 + $0x3c] sm:$0xf]
      %v210 = vld [vmem:[%s1 + $0x40] sm:$0xf]
      %v211 = vld [vmem:[%s1 + $0x44] sm:$0xf]
      %v212 = vld [vmem:[%s2] sm:$0x1]
      %v214 = vlaneseq
      %v215 = vshrl.u32 %v214, 7
      %v216 = vsub.s32 0, %v215
      %v217 = vrot.slane %v212, %v216
      %v235 = vunpack.c.l.b16 %v178
      %v236 = vunpack.c.h.b16 %v178
      %v237 = vunpack.c.l.b16 %v179
      %v238 = vunpack.c.h.b16 %v179
      %v239 = vunpack.c.l.b16 %v180
      %v240 = vunpack.c.h.b16 %v180
      %v241 = vunpack.c.l.b16 %v181
      %v242 = vunpack.c.h.b16 %v181
      %v243 = vunpack.c.l.b16 %v182
      %v244 = vunpack.c.h.b16 %v182
      %v245 = vunpack.c.l.b16 %v183
      %v246 = vunpack.c.h.b16 %v183
      %v247 = vunpack.c.l.b16 %v184
      %v248 = vunpack.c.h.b16 %v184
      %v249 = vunpack.c.l.b16 %v185
      %v250 = vunpack.c.h.b16 %v185
      %v251 = vunpack.c.l.b16 %v186
      %v252 = vunpack.c.h.b16 %v186
      %v253 = vunpack.c.l.b16 %v187
      %v254 = vunpack.c.h.b16 %v187
      %v255 = vunpack.c.l.b16 %v188
      %v256 = vunpack.c.h.b16 %v188
      %v257 = vunpack.c.l.b16 %v189
      %v258 = vunpack.c.h.b16 %v189
      %v259 = vunpack.c.l.b16 %v190
      %v260 = vunpack.c.h.b16 %v190
      %v261 = vunpack.c.l.b16 %v191
      %v262 = vunpack.c.h.b16 %v191
      %v263 = vunpack.c.l.b16 %v192
      %v264 = vunpack.c.h.b16 %v192
      %v265 = vunpack.c.l.b16 %v193
      %v266 = vunpack.c.h.b16 %v193
      %v267 = vpack.c.b16 %v237, %v235
      %v268 = vpack.c.b16 %v238, %v236
      %v269 = vpack.c.b16 %v241, %v239
      %v270 = vpack.c.b16 %v242, %v240
      %v271 = vpack.c.b16 %v245, %v243
      %v272 = vpack.c.b16 %v246, %v244
      %v273 = vpack.c.b16 %v249, %v247
      %v274 = vpack.c.b16 %v250, %v248
      %v275 = vpack.c.b16 %v253, %v251
      %v276 = vpack.c.b16 %v254, %v252
      %v277 = vpack.c.b16 %v257, %v255
      %v278 = vpack.c.b16 %v258, %v256
      %v279 = vpack.c.b16 %v261, %v259
      %v280 = vpack.c.b16 %v262, %v260
      %v281 = vpack.c.b16 %v265, %v263
      %v282 = vpack.c.b16 %v266, %v264
      %v309 = vunpack.c.l.b16 %v194
      %v310 = vunpack.c.l.b16 %v195
      %v311 = vunpack.c.l.b16 %v196
      %v312 = vunpack.c.l.b16 %v197
      %v313 = vunpack.c.l.b16 %v198
      %v314 = vunpack.c.l.b16 %v199
      %v315 = vunpack.c.l.b16 %v200
      %v316 = vunpack.c.l.b16 %v201
      %v317 = vunpack.c.l.b16 %v202
      %v318 = vunpack.c.l.b16 %v203
      %v319 = vunpack.c.l.b16 %v204
      %v320 = vunpack.c.l.b16 %v205
      %v321 = vunpack.c.l.b16 %v206
      %v322 = vunpack.c.l.b16 %v207
      %v323 = vunpack.c.l.b16 %v208
      %v324 = vunpack.c.l.b16 %v209
      %v325 = vunpack.c.l.b16 %v210
      %v326 = vunpack.c.l.b16 %v211
      %v327 = vpack.c.b16 %v310, %v309
      %v328 = vpack.c.b16 %v312, %v311
      %v329 = vpack.c.b16 %v314, %v313
      %v330 = vpack.c.b16 %v316, %v315
      %v331 = vpack.c.b16 %v318, %v317
      %v332 = vpack.c.b16 %v320, %v319
      %v333 = vpack.c.b16 %v322, %v321
      %v334 = vpack.c.b16 %v324, %v323
      %v335 = vpack.c.b16 %v326, %v325
      %vm345 = vcmask 130048
      %v347 = vsel %vm345, %v268, 0
      %v350 = vsel %vm345, %v270, 0
      %v353 = vsel %vm345, %v272, 0
      %v356 = vsel %vm345, %v274, 0
      %v359 = vsel %vm345, %v276, 0
      %v362 = vsel %vm345, %v278, 0
      %v365 = vsel %vm345, %v280, 0
      %v368 = vsel %vm345, %v282, 0
      %370 = vmatprep.subr.bf16.mxu0 0
      %371 = vmatpush1.bf16.msra.mxu0 %v327
      %372 = vmatprep.subr.bf16.mxu0 0
      %373 = vmatpush1.bf16.msra.mxu0 %v328
      %374 = vmatprep.subr.bf16.mxu0 0
      %375 = vmatpush1.bf16.msra.mxu0 %v329
      %376 = vmatprep.subr.bf16.mxu0 0
      %377 = vmatpush1.bf16.msra.mxu0 %v330
      %378 = vmatprep.subr.bf16.mxu0 0
      %379 = vmatpush1.bf16.msra.mxu0 %v331
      %380 = vmatprep.subr.bf16.mxu0 0
      %381 = vmatpush1.bf16.msra.mxu0 %v332
      %382 = vmatprep.subr.bf16.mxu0 0
      %383 = vmatpush1.bf16.msra.mxu0 %v333
      %384 = vmatprep.subr.bf16.mxu0 0
      %385 = vmatpush1.bf16.msra.mxu0 %v334
      %386 = vmatprep.subr.bf16.mxu0 0
      %387 = vmatpush1.bf16.msra.mxu0 %v335
      %388 = vmatprep.subr.bf16.mxu0 0
      %389 = vmatpush1.bf16.msra.mxu0 0
      %390 = vmatprep.subr.bf16.mxu0 0
      %391 = vmatpush1.bf16.msra.mxu0 0
      %392 = vmatprep.subr.bf16.mxu0 0
      %393 = vmatpush1.bf16.msra.mxu0 0
      %394 = vmatprep.subr.bf16.mxu0 0
      %395 = vmatpush1.bf16.msra.mxu0 0
      %396 = vmatprep.subr.bf16.mxu0 0
      %397 = vmatpush1.bf16.msra.mxu0 0
      %398 = vmatprep.subr.bf16.mxu0 0
      %399 = vmatpush1.bf16.msra.mxu0 0
      %400 = vmatprep.subr.bf16.mxu0 0
      %401 = vmatpush1.bf16.msra.mxu0 0
      %402 = vmatprep.mubr.bf16.mxu0 %v347
      %403 = vmatmul.mubr.bf16.gmra.mrb[0].mxu0 %v267
      %v404 = vpop.f32.mrb[0].mxu0
      %v405 = vadd.f32 %v217, %v404
      %v406 = vpop.f32.mrb[0].mxu0
      %v407 = vpop.f32.mrb[0].mxu0
      %v408 = vadd.f32 %v217, %v407
      %v409 = vpop.f32.mrb[0].mxu0
      %410 = vmatprep.mubr.bf16.mxu0 %v350
      %411 = vmatmul.mubr.bf16.gmra.mrb[0].mxu0 %v269
      %v412 = vpop.f32.mrb[0].mxu0
      %v413 = vadd.f32 %v217, %v412
      %v414 = vpop.f32.mrb[0].mxu0
      %v415 = vpop.f32.mrb[0].mxu0
      %v416 = vadd.f32 %v217, %v415
      %v417 = vpop.f32.mrb[0].mxu0
      %418 = vmatprep.mubr.bf16.mxu0 %v353
      %419 = vmatmul.mubr.bf16.gmra.mrb[0].mxu0 %v271
      %v420 = vpop.f32.mrb[0].mxu0
      %v421 = vadd.f32 %v217, %v420
      %v422 = vpop.f32.mrb[0].mxu0
      %v423 = vpop.f32.mrb[0].mxu0
      %v424 = vadd.f32 %v217, %v423
      %v425 = vpop.f32.mrb[0].mxu0
      %426 = vmatprep.mubr.bf16.mxu0 %v356
      %427 = vmatmul.mubr.bf16.gmra.mrb[0].mxu0 %v273
      %v428 = vpop.f32.mrb[0].mxu0
      %v429 = vadd.f32 %v217, %v428
      %v430 = vpop.f32.mrb[0].mxu0
      %v431 = vpop.f32.mrb[0].mxu0
      %v432 = vadd.f32 %v217, %v431
      %v433 = vpop.f32.mrb[0].mxu0
      %434 = vmatprep.mubr.bf16.mxu0 %v359
      %435 = vmatmul.mubr.bf16.gmra.mrb[0].mxu0 %v275
      %v436 = vpop.f32.mrb[0].mxu0
      %v437 = vadd.f32 %v217, %v436
      %v438 = vpop.f32.mrb[0].mxu0
      %v439 = vpop.f32.mrb[0].mxu0
      %v440 = vadd.f32 %v217, %v439
      %v441 = vpop.f32.mrb[0].mxu0
      %442 = vmatprep.mubr.bf16.mxu0 %v362
      %443 = vmatmul.mubr.bf16.gmra.mrb[0].mxu0 %v277
      %v444 = vpop.f32.mrb[0].mxu0
      %v445 = vadd.f32 %v217, %v444
      %v446 = vpop.f32.mrb[0].mxu0
      %v447 = vpop.f32.mrb[0].mxu0
      %v448 = vadd.f32 %v217, %v447
      %v449 = vpop.f32.mrb[0].mxu0
      %450 = vmatprep.mubr.bf16.mxu0 %v365
      %451 = vmatmul.mubr.bf16.gmra.mrb[0].mxu0 %v279
      %v452 = vpop.f32.mrb[0].mxu0
      %v453 = vadd.f32 %v217, %v452
      %v454 = vpop.f32.mrb[0].mxu0
      %v455 = vpop.f32.mrb[0].mxu0
      %v456 = vadd.f32 %v217, %v455
      %v457 = vpop.f32.mrb[0].mxu0
      %458 = vmatprep.mubr.bf16.mxu0 %v368
      %459 = vmatmul.mubr.bf16.gmra.mrb[0].mxu0 %v281
      %v460 = vpop.f32.mrb[0].mxu0
      %v461 = vadd.f32 %v217, %v460
      %v462 = vpop.f32.mrb[0].mxu0
      %v463 = vpop.f32.mrb[0].mxu0
      %v464 = vadd.f32 %v217, %v463
      %v465 = vpop.f32.mrb[0].mxu0
      %466 = vdwg.mxu0
      %467 = vst [vmem:[%s175] sm:$0xff] %v405
      %468 = vst [vmem:[%s175 + $0x8] sm:$0xff] %v408
      %469 = vst [vmem:[%s175 + $0x10] sm:$0xff] %v413
      %470 = vst [vmem:[%s175 + $0x18] sm:$0xff] %v416
      %471 = vst [vmem:[%s175 + $0x20] sm:$0xff] %v421
      %472 = vst [vmem:[%s175 + $0x28] sm:$0xff] %v424
      %473 = vst [vmem:[%s175 + $0x30] sm:$0xff] %v429
      %474 = vst [vmem:[%s175 + $0x38] sm:$0xff] %v432
      %475 = vst [vmem:[%s175 + $0x40] sm:$0xff] %v437
      %476 = vst [vmem:[%s175 + $0x48] sm:$0xff] %v440
      %477 = vst [vmem:[%s175 + $0x50] sm:$0xff] %v445
      %478 = vst [vmem:[%s175 + $0x58] sm:$0xff] %v448
      %479 = vst [vmem:[%s175 + $0x60] sm:$0xff] %v453
      %480 = vst [vmem:[%s175 + $0x68] sm:$0xff] %v456
      %481 = vst [vmem:[%s175 + $0x70] sm:$0xff] %v461
      %482 = vst [vmem:[%s175 + $0x78] sm:$0xff] %v464
      %s483 = smul.u32 16, %s14
      %p484 = scmp.lt.s32.totalorder %s483, 63
      %s485 = scalar_select %p484, %s483, 63
      %s486 = smul.addr %s485, 8
      %s487 = scalar_lea.vmem %s3, %s486
      // Predicated region
      $region33: #{unet_forward.11} parent=31 // pred_check
        %p488 = pneg %p100
      $region34: #{unet_forward.11} parent=31 // pred_check_branch
        %490 = sbr.rel (%p488) target = $region36
      $region35: #{unet_forward.11} parent=31 // pred_region
        %s491 = smul.u32 16, %s14
      $region36: #{unet_forward.11} parent=31 // pred_fallthru
        _
    $region32: #{unet_forward.11} parent=5 // pred_fallthru
      _
    %p492 = scmp.le.s32.totalorder 2, %s9
    // Predicated region
    $region37: #{unet_forward.11} parent=5 // pred_check
      %p493 = pneg %p492
    $region38: #{unet_forward.11} parent=5 // pred_check_branch
      %495 = sbr.rel (%p493) target = $region40
    $region39: #{unet_forward.11} parent=5 // pred_region
      %s496 = ssub.s32 %s9, 2
      // Predicated region
      $region41: #{unet_forward.11} parent=39 // pred_check
        %p497 = pneg %p106
      $region42: #{unet_forward.11} parent=39 // pred_check_branch
        %499 = sbr.rel (%p497) target = $region44
      $region43: #{unet_forward.11} parent=39 // pred_region
        %s500 = smul.u32 16, %s15
        %p501 = scmp.lt.s32.totalorder %s500, 63
        %s502 = scalar_select %p501, %s500, 63
        %s503 = smul.addr %s502, 8
        %s504 = scalar_lea.vmem %s3, %s503
      $region44: #{unet_forward.11} parent=39 // pred_fallthru
        _
    $region40: #{unet_forward.11} parent=5 // pred_fallthru
      _
  $region6: #{unet_forward.11} parent=0 // loop_footer
    %s13 = sadd.s32 1, %s9
  $region7: #{unet_forward.11} parent=0 // loop_footer_branch
    %8 = sbr.rel target = $region3
  $region8: #{unet_forward.11} parent=0 // loop_exit
    _

</llo_original>
